<compile_context>
chip_gen: v6e
topology: v6e:2x2x1
jax: 0.10.0
libtpu: 0.0.40
codegen_flags: <defaults>
</compile_context>

<pallas_src>
import functools

import jax
import jax.numpy as jnp
from jax.experimental import pallas as pl
from jax.experimental.pallas import tpu as pltpu

ATT_SLOPE = 0.2    # GATConv's internal leaky_relu negative_slope
ACT_SLOPE = 0.01   # F.leaky_relu default negative_slope between layers
LANE = 128         # TPU lane width: feature dims padded to this
NEG_BIG = -1e30    # additive mask sentinel (exp underflows to exactly 0)


def _round_up(x, m):
    return (x + m - 1) // m * m


def _gat3_fused_kernel(x_ref, bias_ref,
                       w1_ref, b1_ref, w2_ref, b2_ref, w3_ref, b3_ref,
                       out_ref):
    # Additive adjacency bias: 0 where edge j->i (incl. self-loops), -1e30 else.
    adj_bias = bias_ref[...]                              # (N, N) f32

    def layer(x, w_ref, b_ref, apply_act):
        f_out_p = w_ref.shape[1] - LANE                   # static padded width

        # Single MXU matmul produces both the transformed features and the two
        # per-node attention scalars (folded into the augmented weight):
        #   h_aug = x @ [ w | w@att_dst | w@att_src | 0... ]
        h_aug = jnp.dot(x, w_ref[...], preferred_element_type=jnp.float32)
        h = h_aug[:, :f_out_p]                            # (N, F_out_p), lane-aligned slice
        tail = h_aug[:, f_out_p:]                         # (N, LANE): [a_dst | a_src | 0...]

        # Outer sum z[i, j] = a_dst[i] + a_src[j] as ONE small NT matmul:
        #   lhs = [a_dst | 1 | 0...],  rhs = [1 | a_src | 0...]
        lane = jax.lax.broadcasted_iota(jnp.int32, tail.shape, 1)
        lhs = jnp.where(lane == 1, 1.0, tail)             # (N, LANE)
        rhs = jnp.where(lane == 0, 1.0, tail)             # (N, LANE)
        z = jax.lax.dot_general(lhs, rhs, (((1,), (1,)), ((), ())),
                                preferred_element_type=jnp.float32)  # (N, N)

        # Attention logits: leaky_relu(0.2), then masked via additive bias.
        logits = jnp.maximum(z, ATT_SLOPE * z) + adj_bias

        # Softmax over sources j; normalization deferred to the output.
        m = jnp.max(logits, axis=-1, keepdims=True)
        p = jnp.exp(logits - m)                           # masked entries -> exactly 0
        denom = jnp.sum(p, axis=-1, keepdims=True)
        denom = jnp.maximum(denom, jnp.float32(1e-30))    # self-loops => no-op guard

        # Aggregate unnormalized on the MXU, rescale the (N, F_out) result
        # (N*F_out multiplies instead of N*N divides), add bias.
        out = jnp.dot(p, h, preferred_element_type=jnp.float32)
        out = out * (1.0 / denom) + b_ref[...]
        if apply_act:
            out = jnp.maximum(out, ACT_SLOPE * out)       # leaky_relu(0.01)
        return out

    x1 = layer(x_ref[...], w1_ref, b1_ref, apply_act=True)
    x2 = layer(x1, w2_ref, b2_ref, apply_act=True)
    x3 = layer(x2, w3_ref, b3_ref, apply_act=False)
    out_ref[...] = x3


def _prep_params(params, num_features):
    """One-time prep (run at init, NOT per forward call).

    For each layer builds:
      w_aug : (in_dim_pad, F_out_pad + 128) f32
              [ w (zero-padded) | w@att_dst | w@att_src | zeros ]
      b_p   : (1, F_out_pad) f32 zero-padded bias
    """
    prepped = []
    in_dim = num_features                     # layer-1 input stays unpadded
    for w, att_src, att_dst, bias in params:
        f_in, f_out = w.shape
        f_out_p = _round_up(f_out, LANE)
        w_aug = jnp.zeros((in_dim, f_out_p + LANE), jnp.float32)
        w_aug = w_aug.at[:f_in, :f_out].set(w)
        w_aug = w_aug.at[:f_in, f_out_p].set(w @ att_dst.reshape(-1))      # a_dst col
        w_aug = w_aug.at[:f_in, f_out_p + 1].set(w @ att_src.reshape(-1))  # a_src col
        b_p = jnp.zeros((1, f_out_p), jnp.float32).at[0, :f_out].set(bias.reshape(-1))
        prepped.append((w_aug, b_p))
        in_dim = f_out_p                      # next layer consumes padded width
    return prepped


def _prep_adj_bias(adj):
    """One-time prep: additive softmax mask (0 on edges, -1e30 elsewhere)."""
    return jnp.where(adj > 0, 0.0, NEG_BIG).astype(jnp.float32)


@functools.partial(jax.jit, static_argnames=("num_classes",))
def gat_forward(prepped, adj_bias, x, *, num_classes):
    """Fused 3-layer GAT forward: one pallas_call, everything stays in VMEM."""
    n = x.shape[0]
    f_final_p = prepped[-1][0].shape[1] - LANE

    operands = [x, adj_bias]
    for w_aug, b_p in prepped:
        operands += [w_aug, b_p]

    vmem = functools.partial(pl.BlockSpec, memory_space=pltpu.MemorySpace.VMEM)
    out_padded = pl.pallas_call(
        _gat3_fused_kernel,
        out_shape=jax.ShapeDtypeStruct((n, f_final_p), jnp.float32),
        in_specs=[vmem() for _ in operands],
        out_specs=vmem(),
        compiler_params=pltpu.CompilerParams(
            vmem_limit_bytes=32 * 1024 * 1024),
    )(*operands)
    # Lane-dense padded store in-kernel; narrow class slice fuses here in jit.
    return out_padded[:, :num_classes]


def init_gat_params(key, num_features, num_classes):
    """Deterministic synthetic params matching GATConv shapes (heads=1)."""
    dims = [(num_features, 256), (256, 32), (32, num_classes)]
    params = []
    for f_in, f_out in dims:
        key, k_w, k_s, k_d = jax.random.split(key, 4)
        w = jax.random.normal(k_w, (f_in, f_out), jnp.float32) / jnp.sqrt(f_in)
        att_src = 0.1 * jax.random.normal(k_s, (1, f_out), jnp.float32)
        att_dst = 0.1 * jax.random.normal(k_d, (1, f_out), jnp.float32)
        bias = jnp.zeros((1, f_out), jnp.float32)
        params.append((w, att_src, att_dst, bias))
    return params


# ---------------- pure-JAX reference (same dense formulation) ----------------
def _gat_layer_ref(x, w, a_s, a_d, b, adj, apply_out_act):
    h = x @ w
    asrc = jnp.sum(h * a_s, -1, keepdims=True)
    adst = jnp.sum(h * a_d, -1, keepdims=True)
    logits = adst + asrc.T
    logits = jnp.where(logits >= 0, logits, ATT_SLOPE * logits)
    mask = adj > 0
    logits = jnp.where(mask, logits, NEG_BIG)
    p = jnp.where(mask, jnp.exp(logits - logits.max(-1, keepdims=True)), 0.0)
    attn = p / p.sum(-1, keepdims=True)
    out = attn @ h + b
    if apply_out_act:
        out = jnp.where(out >= 0, out, ACT_SLOPE * out)
    return out


def gat_forward_ref(params, x, adj):
    for i, (w, a_s, a_d, b) in enumerate(params):
        x = _gat_layer_ref(x, w, a_s, a_d, b, adj, i < len(params) - 1)
    return x


if __name__ == "__main__":
    N = 128              # number of graph nodes
    NUM_FEATURES = 32
    NUM_CLASSES = 8
    NUM_EDGES = 512

    key = jax.random.PRNGKey(0)
    k_x, k_src, k_dst, k_params = jax.random.split(key, 4)

    x = jax.random.normal(k_x, (N, NUM_FEATURES), jnp.float32)

    # Synthetic edge_index -> dense adjacency mask (adj[i, j]: edge j -> i),
    # with self-loops added (GATConv default add_self_loops=True).
    src = jax.random.randint(k_src, (NUM_EDGES,), 0, N)
    dst = jax.random.randint(k_dst, (NUM_EDGES,), 0, N)
    adj = jnp.zeros((N, N), jnp.float32).at[dst, src].set(1.0)
    adj = adj.at[jnp.arange(N), jnp.arange(N)].set(1.0)

    params = init_gat_params(k_params, NUM_FEATURES, NUM_CLASSES)

    # One-time prep (hoisted out of the forward path / cached across calls).
    prepped = _prep_params(params, NUM_FEATURES)
    adj_bias = _prep_adj_bias(adj)

    out = gat_forward(prepped, adj_bias, x, num_classes=NUM_CLASSES)
    out = jax.block_until_ready(out)

    ref = gat_forward_ref(params, x, adj)
    assert out.shape == (N, NUM_CLASSES)
    assert bool(jnp.all(jnp.isfinite(out)))
    # Slightly looser than 1e-4: the kernel reorders f32 reductions (att folded
    # into the weight matmul, deferred softmax normalization) vs. the reference.
    assert jnp.allclose(out, ref, rtol=5e-4, atol=5e-4), \
        float(jnp.max(jnp.abs(out - ref)))

    print("KERNEL_OK")
</pallas_src>

<mosaic_0001>
module attributes {stable_mosaic.version = 11 : i64} {
  func.func @_gat3_fused_kernel(%arg0: memref<128x32xf32, #tpu.memory_space<vmem>>, %arg1: memref<128x128xf32, #tpu.memory_space<vmem>>, %arg2: memref<32x384xf32, #tpu.memory_space<vmem>>, %arg3: memref<1x256xf32, #tpu.memory_space<vmem>>, %arg4: memref<256x256xf32, #tpu.memory_space<vmem>>, %arg5: memref<1x128xf32, #tpu.memory_space<vmem>>, %arg6: memref<128x256xf32, #tpu.memory_space<vmem>>, %arg7: memref<1x128xf32, #tpu.memory_space<vmem>>, %arg8: memref<128x128xf32, #tpu.memory_space<vmem>>) attributes {dimension_semantics = [], scalar_prefetch = 0 : i64, scratch_operands = 0 : i64, tpu.core_type = #tpu.core_type<tc>} {
    %c0 = arith.constant 0 : index
    %c0_0 = arith.constant 0 : index
    %0 = vector.load %arg1[%c0, %c0_0] : memref<128x128xf32, #tpu.memory_space<vmem>>, vector<128x128xf32>
    %c0_1 = arith.constant 0 : index
    %c0_2 = arith.constant 0 : index
    %1 = vector.load %arg0[%c0_1, %c0_2] : memref<128x32xf32, #tpu.memory_space<vmem>>, vector<128x32xf32>
    %c0_3 = arith.constant 0 : index
    %c0_4 = arith.constant 0 : index
    %2 = vector.load %arg2[%c0_3, %c0_4] : memref<32x384xf32, #tpu.memory_space<vmem>>, vector<32x384xf32>
    %cst = arith.constant dense<0.000000e+00> : vector<128x384xf32>
    %3 = tpu.matmul %1, %2, %cst {dimension_numbers = #tpu.dot_dimension_numbers<[1], [0], [0], [1], [0, 0, 1, 1], [], []>} : vector<128x32xf32>, vector<32x384xf32>, vector<128x384xf32> -> vector<128x384xf32>
    %4 = vector.extract_strided_slice %3 {offsets = [0, 0], sizes = [128, 256], strides = [1, 1]} : vector<128x384xf32> to vector<128x256xf32>
    %5 = vector.extract_strided_slice %3 {offsets = [0, 256], sizes = [128, 128], strides = [1, 1]} : vector<128x384xf32> to vector<128x128xf32>
    %6 = tpu.iota {dimensions = array<i32: 1>} : vector<128x128xi32>
    %c1_i32 = arith.constant 1 : i32
    %7 = vector.broadcast %c1_i32 : i32 to vector<128x128xi32>
    %8 = arith.cmpi eq, %6, %7 : vector<128x128xi32>
    %cst_5 = arith.constant 1.000000e+00 : f32
    %9 = vector.broadcast %cst_5 : f32 to vector<128x128xf32>
    %10 = arith.select %8, %9, %5 : vector<128x128xi1>, vector<128x128xf32>
    %c0_i32 = arith.constant 0 : i32
    %11 = vector.broadcast %c0_i32 : i32 to vector<128x128xi32>
    %12 = arith.cmpi eq, %6, %11 : vector<128x128xi32>
    %cst_6 = arith.constant 1.000000e+00 : f32
    %13 = vector.broadcast %cst_6 : f32 to vector<128x128xf32>
    %14 = arith.select %12, %13, %5 : vector<128x128xi1>, vector<128x128xf32>
    %cst_7 = arith.constant dense<0.000000e+00> : vector<128x128xf32>
    %15 = tpu.matmul %10, %14, %cst_7 {dimension_numbers = #tpu.dot_dimension_numbers<[1], [1], [0], [0], [0, 0, 1, 0], [], []>} : vector<128x128xf32>, vector<128x128xf32>, vector<128x128xf32> -> vector<128x128xf32>
    %cst_8 = arith.constant 2.000000e-01 : f32
    %16 = vector.broadcast %cst_8 : f32 to vector<128x128xf32>
    %17 = arith.mulf %16, %15 : vector<128x128xf32>
    %18 = arith.maximumf %15, %17 : vector<128x128xf32>
    %19 = arith.addf %18, %0 : vector<128x128xf32>
    %cst_9 = arith.constant dense<0xFF800000> : vector<128xf32>
    %20 = vector.multi_reduction <maximumf>, %19, %cst_9 [1] : vector<128x128xf32> to vector<128xf32>
    %21 = vector.shape_cast %20 : vector<128xf32> to vector<128x1xf32>
    %22 = vector.broadcast %21 : vector<128x1xf32> to vector<128x128xf32>
    %23 = arith.subf %19, %22 : vector<128x128xf32>
    %24 = math.exp %23 : vector<128x128xf32>
    %cst_10 = arith.constant dense<0.000000e+00> : vector<128xf32>
    %25 = vector.multi_reduction <add>, %24, %cst_10 [1] : vector<128x128xf32> to vector<128xf32>
    %26 = vector.shape_cast %25 : vector<128xf32> to vector<128x1xf32>
    %cst_11 = arith.constant 1.000000e-30 : f32
    %27 = vector.broadcast %cst_11 : f32 to vector<128x1xf32>
    %28 = arith.maximumf %26, %27 : vector<128x1xf32>
    %cst_12 = arith.constant dense<0.000000e+00> : vector<128x256xf32>
    %29 = tpu.matmul %24, %4, %cst_12 {dimension_numbers = #tpu.dot_dimension_numbers<[1], [0], [0], [1], [0, 0, 1, 1], [], []>} : vector<128x128xf32>, vector<128x256xf32>, vector<128x256xf32> -> vector<128x256xf32>
    %cst_13 = arith.constant 1.000000e+00 : f32
    %30 = vector.broadcast %cst_13 : f32 to vector<128x1xf32>
    %31 = arith.divf %30, %28 : vector<128x1xf32>
    %32 = vector.broadcast %31 : vector<128x1xf32> to vector<128x256xf32>
    %33 = arith.mulf %29, %32 : vector<128x256xf32>
    %c0_14 = arith.constant 0 : index
    %c0_15 = arith.constant 0 : index
    %34 = vector.load %arg3[%c0_14, %c0_15] : memref<1x256xf32, #tpu.memory_space<vmem>>, vector<1x256xf32>
    %35 = vector.broadcast %34 : vector<1x256xf32> to vector<128x256xf32>
    %36 = arith.addf %33, %35 : vector<128x256xf32>
    %cst_16 = arith.constant 0.00999999977 : f32
    %37 = vector.broadcast %cst_16 : f32 to vector<128x256xf32>
    %38 = arith.mulf %37, %36 : vector<128x256xf32>
    %39 = arith.maximumf %36, %38 : vector<128x256xf32>
    %c0_17 = arith.constant 0 : index
    %c0_18 = arith.constant 0 : index
    %40 = vector.load %arg4[%c0_17, %c0_18] : memref<256x256xf32, #tpu.memory_space<vmem>>, vector<256x256xf32>
    %cst_19 = arith.constant dense<0.000000e+00> : vector<128x256xf32>
    %41 = tpu.matmul %39, %40, %cst_19 {dimension_numbers = #tpu.dot_dimension_numbers<[1], [0], [0], [1], [0, 0, 1, 1], [], []>} : vector<128x256xf32>, vector<256x256xf32>, vector<128x256xf32> -> vector<128x256xf32>
    %42 = vector.extract_strided_slice %41 {offsets = [0, 0], sizes = [128, 128], strides = [1, 1]} : vector<128x256xf32> to vector<128x128xf32>
    %43 = vector.extract_strided_slice %41 {offsets = [0, 128], sizes = [128, 128], strides = [1, 1]} : vector<128x256xf32> to vector<128x128xf32>
    %44 = tpu.iota {dimensions = array<i32: 1>} : vector<128x128xi32>
    %c1_i32_20 = arith.constant 1 : i32
    %45 = vector.broadcast %c1_i32_20 : i32 to vector<128x128xi32>
    %46 = arith.cmpi eq, %44, %45 : vector<128x128xi32>
    %cst_21 = arith.constant 1.000000e+00 : f32
    %47 = vector.broadcast %cst_21 : f32 to vector<128x128xf32>
    %48 = arith.select %46, %47, %43 : vector<128x128xi1>, vector<128x128xf32>
    %c0_i32_22 = arith.constant 0 : i32
    %49 = vector.broadcast %c0_i32_22 : i32 to vector<128x128xi32>
    %50 = arith.cmpi eq, %44, %49 : vector<128x128xi32>
    %cst_23 = arith.constant 1.000000e+00 : f32
    %51 = vector.broadcast %cst_23 : f32 to vector<128x128xf32>
    %52 = arith.select %50, %51, %43 : vector<128x128xi1>, vector<128x128xf32>
    %cst_24 = arith.constant dense<0.000000e+00> : vector<128x128xf32>
    %53 = tpu.matmul %48, %52, %cst_24 {dimension_numbers = #tpu.dot_dimension_numbers<[1], [1], [0], [0], [0, 0, 1, 0], [], []>} : vector<128x128xf32>, vector<128x128xf32>, vector<128x128xf32> -> vector<128x128xf32>
    %cst_25 = arith.constant 2.000000e-01 : f32
    %54 = vector.broadcast %cst_25 : f32 to vector<128x128xf32>
    %55 = arith.mulf %54, %53 : vector<128x128xf32>
    %56 = arith.maximumf %53, %55 : vector<128x128xf32>
    %57 = arith.addf %56, %0 : vector<128x128xf32>
    %cst_26 = arith.constant dense<0xFF800000> : vector<128xf32>
    %58 = vector.multi_reduction <maximumf>, %57, %cst_26 [1] : vector<128x128xf32> to vector<128xf32>
    %59 = vector.shape_cast %58 : vector<128xf32> to vector<128x1xf32>
    %60 = vector.broadcast %59 : vector<128x1xf32> to vector<128x128xf32>
    %61 = arith.subf %57, %60 : vector<128x128xf32>
    %62 = math.exp %61 : vector<128x128xf32>
    %cst_27 = arith.constant dense<0.000000e+00> : vector<128xf32>
    %63 = vector.multi_reduction <add>, %62, %cst_27 [1] : vector<128x128xf32> to vector<128xf32>
    %64 = vector.shape_cast %63 : vector<128xf32> to vector<128x1xf32>
    %cst_28 = arith.constant 1.000000e-30 : f32
    %65 = vector.broadcast %cst_28 : f32 to vector<128x1xf32>
    %66 = arith.maximumf %64, %65 : vector<128x1xf32>
    %cst_29 = arith.constant dense<0.000000e+00> : vector<128x128xf32>
    %67 = tpu.matmul %62, %42, %cst_29 {dimension_numbers = #tpu.dot_dimension_numbers<[1], [0], [0], [1], [0, 0, 1, 1], [], []>} : vector<128x128xf32>, vector<128x128xf32>, vector<128x128xf32> -> vector<128x128xf32>
    %cst_30 = arith.constant 1.000000e+00 : f32
    %68 = vector.broadcast %cst_30 : f32 to vector<128x1xf32>
    %69 = arith.divf %68, %66 : vector<128x1xf32>
    %70 = vector.broadcast %69 : vector<128x1xf32> to vector<128x128xf32>
    %71 = arith.mulf %67, %70 : vector<128x128xf32>
    %c0_31 = arith.constant 0 : index
    %c0_32 = arith.constant 0 : index
    %72 = vector.load %arg5[%c0_31, %c0_32] : memref<1x128xf32, #tpu.memory_space<vmem>>, vector<1x128xf32>
    %73 = vector.broadcast %72 : vector<1x128xf32> to vector<128x128xf32>
    %74 = arith.addf %71, %73 : vector<128x128xf32>
    %cst_33 = arith.constant 0.00999999977 : f32
    %75 = vector.broadcast %cst_33 : f32 to vector<128x128xf32>
    %76 = arith.mulf %75, %74 : vector<128x128xf32>
    %77 = arith.maximumf %74, %76 : vector<128x128xf32>
    %c0_34 = arith.constant 0 : index
    %c0_35 = arith.constant 0 : index
    %78 = vector.load %arg6[%c0_34, %c0_35] : memref<128x256xf32, #tpu.memory_space<vmem>>, vector<128x256xf32>
    %cst_36 = arith.constant dense<0.000000e+00> : vector<128x256xf32>
    %79 = tpu.matmul %77, %78, %cst_36 {dimension_numbers = #tpu.dot_dimension_numbers<[1], [0], [0], [1], [0, 0, 1, 1], [], []>} : vector<128x128xf32>, vector<128x256xf32>, vector<128x256xf32> -> vector<128x256xf32>
    %80 = vector.extract_strided_slice %79 {offsets = [0, 0], sizes = [128, 128], strides = [1, 1]} : vector<128x256xf32> to vector<128x128xf32>
    %81 = vector.extract_strided_slice %79 {offsets = [0, 128], sizes = [128, 128], strides = [1, 1]} : vector<128x256xf32> to vector<128x128xf32>
    %82 = tpu.iota {dimensions = array<i32: 1>} : vector<128x128xi32>
    %c1_i32_37 = arith.constant 1 : i32
    %83 = vector.broadcast %c1_i32_37 : i32 to vector<128x128xi32>
    %84 = arith.cmpi eq, %82, %83 : vector<128x128xi32>
    %cst_38 = arith.constant 1.000000e+00 : f32
    %85 = vector.broadcast %cst_38 : f32 to vector<128x128xf32>
    %86 = arith.select %84, %85, %81 : vector<128x128xi1>, vector<128x128xf32>
    %c0_i32_39 = arith.constant 0 : i32
    %87 = vector.broadcast %c0_i32_39 : i32 to vector<128x128xi32>
    %88 = arith.cmpi eq, %82, %87 : vector<128x128xi32>
    %cst_40 = arith.constant 1.000000e+00 : f32
    %89 = vector.broadcast %cst_40 : f32 to vector<128x128xf32>
    %90 = arith.select %88, %89, %81 : vector<128x128xi1>, vector<128x128xf32>
    %cst_41 = arith.constant dense<0.000000e+00> : vector<128x128xf32>
    %91 = tpu.matmul %86, %90, %cst_41 {dimension_numbers = #tpu.dot_dimension_numbers<[1], [1], [0], [0], [0, 0, 1, 0], [], []>} : vector<128x128xf32>, vector<128x128xf32>, vector<128x128xf32> -> vector<128x128xf32>
    %cst_42 = arith.constant 2.000000e-01 : f32
    %92 = vector.broadcast %cst_42 : f32 to vector<128x128xf32>
    %93 = arith.mulf %92, %91 : vector<128x128xf32>
    %94 = arith.maximumf %91, %93 : vector<128x128xf32>
    %95 = arith.addf %94, %0 : vector<128x128xf32>
    %cst_43 = arith.constant dense<0xFF800000> : vector<128xf32>
    %96 = vector.multi_reduction <maximumf>, %95, %cst_43 [1] : vector<128x128xf32> to vector<128xf32>
    %97 = vector.shape_cast %96 : vector<128xf32> to vector<128x1xf32>
    %98 = vector.broadcast %97 : vector<128x1xf32> to vector<128x128xf32>
    %99 = arith.subf %95, %98 : vector<128x128xf32>
    %100 = math.exp %99 : vector<128x128xf32>
    %cst_44 = arith.constant dense<0.000000e+00> : vector<128xf32>
    %101 = vector.multi_reduction <add>, %100, %cst_44 [1] : vector<128x128xf32> to vector<128xf32>
    %102 = vector.shape_cast %101 : vector<128xf32> to vector<128x1xf32>
    %cst_45 = arith.constant 1.000000e-30 : f32
    %103 = vector.broadcast %cst_45 : f32 to vector<128x1xf32>
    %104 = arith.maximumf %102, %103 : vector<128x1xf32>
    %cst_46 = arith.constant dense<0.000000e+00> : vector<128x128xf32>
    %105 = tpu.matmul %100, %80, %cst_46 {dimension_numbers = #tpu.dot_dimension_numbers<[1], [0], [0], [1], [0, 0, 1, 1], [], []>} : vector<128x128xf32>, vector<128x128xf32>, vector<128x128xf32> -> vector<128x128xf32>
    %cst_47 = arith.constant 1.000000e+00 : f32
    %106 = vector.broadcast %cst_47 : f32 to vector<128x1xf32>
    %107 = arith.divf %106, %104 : vector<128x1xf32>
    %108 = vector.broadcast %107 : vector<128x1xf32> to vector<128x128xf32>
    %109 = arith.mulf %105, %108 : vector<128x128xf32>
    %c0_48 = arith.constant 0 : index
    %c0_49 = arith.constant 0 : index
    %110 = vector.load %arg7[%c0_48, %c0_49] : memref<1x128xf32, #tpu.memory_space<vmem>>, vector<1x128xf32>
    %111 = vector.broadcast %110 : vector<1x128xf32> to vector<128x128xf32>
    %112 = arith.addf %109, %111 : vector<128x128xf32>
    %c0_50 = arith.constant 0 : index
    %c0_51 = arith.constant 0 : index
    %113 = vector.load %arg8[%c0_50, %c0_51] : memref<128x128xf32, #tpu.memory_space<vmem>>, vector<128x128xf32>
    tpu.vector_store %arg8[%c0_50, %c0_51], %112 {strides = array<i32>} : memref<128x128xf32, #tpu.memory_space<vmem>>, vector<128x128xf32>,
    return
  }
}

</mosaic_0001>

<llo_original>
// kernel: gat_forward.1
$region0: #{gat_forward.1}
  #allocation0 [shape = 'u32[]', space=smem, size = 0x4, offset = 0x4, fixed_abs, tag = 'smem constant byte address 0x4 - core index']
  #allocation1 [shape = 'u32[144,128]{1,0:T(1,128)}', space=vmem, size = 0x12000, scoped, tag = 'internal scratch']
  %s0 = inlined_call_operand.vmem [shape: f32[128,32], index: 0, kind: input, shape index: {}]
  %s1 = inlined_call_operand.vmem [shape: f32[128,128], index: 1, kind: input, shape index: {}]
  %s2 = inlined_call_operand.hbm [shape: f32[32,384], index: 2, kind: input, shape index: {}]
  %s3 = inlined_call_operand.vmem [shape: f32[1,256], index: 3, kind: input, shape index: {}]
  %s4 = inlined_call_operand.hbm [shape: f32[256,256], index: 4, kind: input, shape index: {}]
  %s5 = inlined_call_operand.vmem [shape: f32[1,128], index: 5, kind: input, shape index: {}]
  %s6 = inlined_call_operand.hbm [shape: f32[128,256], index: 6, kind: input, shape index: {}]
  %s7 = inlined_call_operand.vmem [shape: f32[1,128], index: 7, kind: input, shape index: {}]
  %s8 = inlined_call_operand.vmem [shape: f32[128,128], index: 8, kind: output, shape index: {}]
  %s9 = sld [smem:[#allocation0]]
  $region54: #{gat_forward.1} parent=0
    _
  %s11 = ssub.s32 1, %s9
  %s12 = scalar_select 0, %s11, %s9
  $region1: #{gat_forward.1} parent=0
    #allocation2 [shape = 'u8[49152]{0}', space=vmem, size = 0xc000, scoped, tag = 'input window, operand 2, single buffered']
    #allocation3 [shape = 's32[1]{0}', space=sflag, size = 0x4, scoped, tag = 'scoped memory for gat_forward.1']
    #allocation4 [shape = 'u8[262144]{0}', space=vmem, size = 0x40000, scoped, tag = 'input window, operand 4, single buffered']
    #allocation5 [shape = 's32[1]{0}', space=sflag, size = 0x4, scoped, tag = 'scoped memory for gat_forward.1']
    #allocation6 [shape = 'u8[131072]{0}', space=vmem, size = 0x20000, scoped, tag = 'input window, operand 6, single buffered']
    %13 = vsyncpa [#allocation3], 0
    %14 = vsyncpa [#allocation5], 0
    // Predicated region
    $region2: #{gat_forward.1} parent=1 // pred_check
      _
    $region3: #{gat_forward.1} parent=1 // pred_check_branch
      %16 = sbr.rel (0) target = $region5
    $region4: #{gat_forward.1} parent=1 // pred_region
      _
    $region5: #{gat_forward.1} parent=1 // pred_fallthru
      _
    // Predicated region
    $region6: #{gat_forward.1} parent=1 // pred_check
      _
    $region7: #{gat_forward.1} parent=1 // pred_check_branch
      %18 = sbr.rel (0) target = $region9
    $region8: #{gat_forward.1} parent=1 // pred_region
      _
    $region9: #{gat_forward.1} parent=1 // pred_fallthru
      _
    // Predicated region
    $region10: #{gat_forward.1} parent=1 // pred_check
      _
    $region11: #{gat_forward.1} parent=1 // pred_check_branch
      %20 = sbr.rel (0) target = $region13
    $region12: #{gat_forward.1} parent=1 // pred_region
      %s22 = ssub.s32 1536, 1536
      %23 = vsyncadd [#allocation3], %s22
      %s24 = sshll.u32 [#allocation2], 4
      %s25 = int_to_ptr.vmem [resolvable:$true] %s24
      %30 = dma.hbm_to_vmem [thread:$0]  %s2, 1536, %s25, [#allocation3], 384, 384, 24
    $region13: #{gat_forward.1} parent=1 // pred_fallthru
      _
    // Predicated region
    $region14: #{gat_forward.1} parent=1 // pred_check
      _
    $region15: #{gat_forward.1} parent=1 // pred_check_branch
      %32 = sbr.rel (0) target = $region17
    $region16: #{gat_forward.1} parent=1 // pred_region
      _
    $region17: #{gat_forward.1} parent=1 // pred_fallthru
      _
    // Predicated region
    $region18: #{gat_forward.1} parent=1 // pred_check
      _
    $region19: #{gat_forward.1} parent=1 // pred_check_branch
      %34 = sbr.rel (0) target = $region21
    $region20: #{gat_forward.1} parent=1 // pred_region
      %s36 = ssub.s32 8192, 8192
      %37 = vsyncadd [#allocation5], %s36
      %s38 = sshll.u32 [#allocation4], 4
      %s39 = int_to_ptr.vmem [resolvable:$true] %s38
      %44 = dma.hbm_to_vmem [thread:$0]  %s4, 8192, %s39, [#allocation5], 256, 256, 16
    $region21: #{gat_forward.1} parent=1 // pred_fallthru
      _
    // Predicated region
    $region22: #{gat_forward.1} parent=1 // pred_check
      _
    $region23: #{gat_forward.1} parent=1 // pred_check_branch
      %46 = sbr.rel (0) target = $region25
    $region24: #{gat_forward.1} parent=1 // pred_region
      _
    $region25: #{gat_forward.1} parent=1 // pred_fallthru
      _
    // Predicated region
    $region26: #{gat_forward.1} parent=1 // pred_check
      _
    $region27: #{gat_forward.1} parent=1 // pred_check_branch
      %48 = sbr.rel (0) target = $region29
    $region28: #{gat_forward.1} parent=1 // pred_region
      %s50 = ssub.s32 4096, 4096
      %51 = vsyncadd [#allocation5], %s50
      %s52 = sshll.u32 [#allocation6], 4
      %s53 = int_to_ptr.vmem [resolvable:$true] %s52
      %58 = dma.hbm_to_vmem [thread:$0]  %s6, 4096, %s53, [#allocation5], 256, 256, 16
    $region29: #{gat_forward.1} parent=1 // pred_fallthru
      _
    // Predicated region
    $region30: #{gat_forward.1} parent=1 // pred_check
      _
    $region31: #{gat_forward.1} parent=1 // pred_check_branch
      %60 = sbr.rel (0) target = $region33
    $region32: #{gat_forward.1} parent=1 // pred_region
      _
    $region33: #{gat_forward.1} parent=1 // pred_fallthru
      _
    // Predicated region
    $region34: #{gat_forward.1} parent=1 // pred_check
      _
    $region35: #{gat_forward.1} parent=1 // pred_check_branch
      %62 = sbr.rel (0) target = $region37
    $region36: #{gat_forward.1} parent=1 // pred_region
      %63 = dma.done [#allocation3], 1536
    $region37: #{gat_forward.1} parent=1 // pred_fallthru
      _
    // Predicated region
    $region38: #{gat_forward.1} parent=1 // pred_check
      _
    $region39: #{gat_forward.1} parent=1 // pred_check_branch
      %65 = sbr.rel (0) target = $region41
    $region40: #{gat_forward.1} parent=1 // pred_region
      %66 = dma.done [#allocation5], 8192
    $region41: #{gat_forward.1} parent=1 // pred_fallthru
      _
    // Predicated region
    $region42: #{gat_forward.1} parent=1 // pred_check
      _
    $region43: #{gat_forward.1} parent=1 // pred_check_branch
      %68 = sbr.rel (0) target = $region45
    $region44: #{gat_forward.1} parent=1 // pred_region
      %69 = dma.done [#allocation5], 4096
    $region45: #{gat_forward.1} parent=1 // pred_fallthru
      _
    %v70 = vld [vmem:[%s1] sm:$0xff]
    %v71 = vld [vmem:[%s1 + $0x8] sm:$0xff]
    %v72 = vld [vmem:[%s1 + $0x10] sm:$0xff]
    %v73 = vld [vmem:[%s1 + $0x18] sm:$0xff]
    %v74 = vld [vmem:[%s1 + $0x20] sm:$0xff]
    %v75 = vld [vmem:[%s1 + $0x28] sm:$0xff]
    %v76 = vld [vmem:[%s1 + $0x30] sm:$0xff]
    %v77 = vld [vmem:[%s1 + $0x38] sm:$0xff]
    %v78 = vld [vmem:[%s1 + $0x40] sm:$0xff]
    %v79 = vld [vmem:[%s1 + $0x48] sm:$0xff]
    %v80 = vld [vmem:[%s1 + $0x50] sm:$0xff]
    %v81 = vld [vmem:[%s1 + $0x58] sm:$0xff]
    %v82 = vld [vmem:[%s1 + $0x60] sm:$0xff]
    %v83 = vld [vmem:[%s1 + $0x68] sm:$0xff]
    %v84 = vld [vmem:[%s1 + $0x70] sm:$0xff]
    %v85 = vld [vmem:[%s1 + $0x78] sm:$0xff]
    %v86 = vld [vmem:[%s0] sm:$0xff]
    %v87 = vld [vmem:[%s0 + $0x8] sm:$0xff]
    %v88 = vld [vmem:[%s0 + $0x10] sm:$0xff]
    %v89 = vld [vmem:[%s0 + $0x18] sm:$0xff]
    %v90 = vld [vmem:[%s0 + $0x20] sm:$0xff]
    %v91 = vld [vmem:[%s0 + $0x28] sm:$0xff]
    %v92 = vld [vmem:[%s0 + $0x30] sm:$0xff]
    %v93 = vld [vmem:[%s0 + $0x38] sm:$0xff]
    %v94 = vld [vmem:[%s0 + $0x40] sm:$0xff]
    %v95 = vld [vmem:[%s0 + $0x48] sm:$0xff]
    %v96 = vld [vmem:[%s0 + $0x50] sm:$0xff]
    %v97 = vld [vmem:[%s0 + $0x58] sm:$0xff]
    %v98 = vld [vmem:[%s0 + $0x60] sm:$0xff]
    %v99 = vld [vmem:[%s0 + $0x68] sm:$0xff]
    %v100 = vld [vmem:[%s0 + $0x70] sm:$0xff]
    %v101 = vld [vmem:[%s0 + $0x78] sm:$0xff]
    %v102 = vld [vmem:[#allocation2] sm:$0xff]
    %v103 = vld [vmem:[#allocation2 + $0x8] sm:$0xff]
    %v104 = vld [vmem:[#allocation2 + $0x10] sm:$0xff]
    %v105 = vld [vmem:[#allocation2 + $0x18] sm:$0xff]
    %v106 = vld [vmem:[#allocation2 + $0x20] sm:$0xff]
    %v107 = vld [vmem:[#allocation2 + $0x28] sm:$0xff]
    %v108 = vld [vmem:[#allocation2 + $0x30] sm:$0xff]
    %v109 = vld [vmem:[#allocation2 + $0x38] sm:$0xff]
    %v110 = vld [vmem:[#allocation2 + $0x40] sm:$0xff]
    %v111 = vld [vmem:[#allocation2 + $0x48] sm:$0xff]
    %v112 = vld [vmem:[#allocation2 + $0x50] sm:$0xff]
    %v113 = vld [vmem:[#allocation2 + $0x58] sm:$0xff]
    %vm114 = vcmask 261120
    %v116 = vsel %vm114, %v86, 0
    %v119 = vsel %vm114, %v87, 0
    %v122 = vsel %vm114, %v88, 0
    %v125 = vsel %vm114, %v89, 0
    %v128 = vsel %vm114, %v90, 0
    %v131 = vsel %vm114, %v91, 0
    %v134 = vsel %vm114, %v92, 0
    %v137 = vsel %vm114, %v93, 0
    %v140 = vsel %vm114, %v94, 0
    %v143 = vsel %vm114, %v95, 0
    %v146 = vsel %vm114, %v96, 0
    %v149 = vsel %vm114, %v97, 0
    %v152 = vsel %vm114, %v98, 0
    %v155 = vsel %vm114, %v99, 0
    %v158 = vsel %vm114, %v100, 0
    %v161 = vsel %vm114, %v101, 0
    %163 = vmatprep.subr.mxu0 0.0
    %164 = vmatpush1.msra.mxu0 0.0
    %165 = vmatprep.subr.mxu0 0.0
    %166 = vmatpush1.msra.mxu0 0.0
    %167 = vmatprep.subr.mxu0 0.0
    %168 = vmatpush1.msra.mxu0 0.0
    %169 = vmatprep.subr.mxu0 0.0
    %170 = vmatpush1.msra.mxu0 0.0
    %171 = vmatprep.subr.mxu0 0.0
    %172 = vmatpush1.msra.mxu0 0.0
    %173 = vmatprep.subr.mxu0 0.0
    %174 = vmatpush1.msra.mxu0 0.0
    %175 = vmatprep.subr.mxu0 0.0
    %176 = vmatpush1.msra.mxu0 0.0
    %177 = vmatprep.subr.mxu0 0.0
    %178 = vmatpush1.msra.mxu0 0.0
    %179 = vmatprep.subr.mxu0 0.0
    %180 = vmatpush1.msra.mxu0 0.0
    %181 = vmatprep.subr.mxu0 0.0
    %182 = vmatpush1.msra.mxu0 0.0
    %183 = vmatprep.subr.mxu0 0.0
    %184 = vmatpush1.msra.mxu0 0.0
    %185 = vmatprep.subr.mxu0 0.0
    %186 = vmatpush1.msra.mxu0 0.0
    %187 = vmatprep.subr.mxu0 %v112
    %188 = vmatpush1.msra.mxu0 %v111
    %189 = vmatprep.subr.mxu0 %v109
    %190 = vmatpush1.msra.mxu0 %v108
    %191 = vmatprep.subr.mxu0 %v106
    %192 = vmatpush1.msra.mxu0 %v105
    %193 = vmatprep.subr.mxu0 %v103
    %194 = vmatpush1.msra.mxu0 %v102
    %195 = vmatprep.subr.mxu0 0.0
    %196 = vmatpush2.msra.mxu0 0.0
    %197 = vmatprep.subr.mxu0 0.0
    %198 = vmatpush2.msra.mxu0 0.0
    %199 = vmatprep.subr.mxu0 0.0
    %200 = vmatpush2.msra.mxu0 0.0
    %201 = vmatprep.subr.mxu0 0.0
    %202 = vmatpush2.msra.mxu0 0.0
    %203 = vmatprep.subr.mxu0 0.0
    %204 = vmatpush2.msra.mxu0 0.0
    %205 = vmatprep.subr.mxu0 0.0
    %206 = vmatpush2.msra.mxu0 0.0
    %207 = vmatprep.subr.mxu0 0.0
    %208 = vmatpush2.msra.mxu0 0.0
    %209 = vmatprep.subr.mxu0 0.0
    %210 = vmatpush2.msra.mxu0 0.0
    %211 = vmatprep.subr.mxu0 0.0
    %212 = vmatpush2.msra.mxu0 0.0
    %213 = vmatprep.subr.mxu0 0.0
    %214 = vmatpush2.msra.mxu0 0.0
    %215 = vmatprep.subr.mxu0 0.0
    %216 = vmatpush2.msra.mxu0 0.0
    %217 = vmatprep.subr.mxu0 0.0
    %218 = vmatpush2.msra.mxu0 0.0
    %219 = vmatprep.subr.mxu0 0.0
    %220 = vmatpush2.msra.mxu0 0.0
    %221 = vmatprep.subr.mxu0 0.0
    %222 = vmatpush2.msra.mxu0 0.0
    %223 = vmatprep.subr.mxu0 0.0
    %224 = vmatpush2.msra.mxu0 0.0
    %225 = vmatprep.subr.mxu0 0.0
    %226 = vmatpush2.msra.mxu0 0.0
    %227 = vmatprep.mubr.f32.mxu0 0.0
    %228 = vmatmul.mubr.f32.gmra.mxu0 %v116
    %v229 = vpop.f32.mrf.mxu0
    %v230 = vadd.f32 0.0, %v229
    %v231 = vpop.f32.mrf.mxu0
    %v232 = vadd.f32 0.0, %v231
    %233 = vmatprep.mubr.f32.mxu0 0.0
    %234 = vmatmul.mubr.f32.gmra.mxu0 %v119
    %v235 = vpop.f32.mrf.mxu0
    %v236 = vadd.f32 0.0, %v235
    %v237 = vpop.f32.mrf.mxu0
    %v238 = vadd.f32 0.0, %v237
    %239 = vmatprep.mubr.f32.mxu0 0.0
    %240 = vmatmul.mubr.f32.gmra.mxu0 %v122
    %v241 = vpop.f32.mrf.mxu0
    %v242 = vadd.f32 0.0, %v241
    %v243 = vpop.f32.mrf.mxu0
    %v244 = vadd.f32 0.0, %v243
    %245 = vmatprep.mubr.f32.mxu0 0.0
    %246 = vmatmul.mubr.f32.gmra.mxu0 %v125
    %v247 = vpop.f32.mrf.mxu0
    %v248 = vadd.f32 0.0, %v247
    %v249 = vpop.f32.mrf.mxu0
    %v250 = vadd.f32 0.0, %v249
    %251 = vmatprep.mubr.f32.mxu0 0.0
    %252 = vmatmul.mubr.f32.gmra.mxu0 %v128
    %v253 = vpop.f32.mrf.mxu0
    %v254 = vadd.f32 0.0, %v253
    %v255 = vpop.f32.mrf.mxu0
    %v256 = vadd.f32 0.0, %v255
    %257 = vmatprep.mubr.f32.mxu0 0.0
    %258 = vmatmul.mubr.f32.gmra.mxu0 %v131
    %v259 = vpop.f32.mrf.mxu0
    %v260 = vadd.f32 0.0, %v259
    %v261 = vpop.f32.mrf.mxu0
    %v262 = vadd.f32 0.0, %v261
    %263 = vmatprep.mubr.f32.mxu0 0.0
    %264 = vmatmul.mubr.f32.gmra.mxu0 %v134
    %v265 = vpop.f32.mrf.mxu0
    %v266 = vadd.f32 0.0, %v265
    %v267 = vpop.f32.mrf.mxu0
    %v268 = vadd.f32 0.0, %v267
    %269 = vmatprep.mubr.f32.mxu0 0.0
    %270 = vmatmul.mubr.f32.gmra.mxu0 %v137
    %v271 = vpop.f32.mrf.mxu0
    %v272 = vadd.f32 0.0, %v271
    %v273 = vpop.f32.mrf.mxu0
    %v274 = vadd.f32 0.0, %v273
    %275 = vmatprep.mubr.f32.mxu0 0.0
    %276 = vmatmul.mubr.f32.gmra.mxu0 %v140
    %v277 = vpop.f32.mrf.mxu0
    %v278 = vadd.f32 0.0, %v277
    %v279 = vpop.f32.mrf.mxu0
    %v280 = vadd.f32 0.0, %v279
    %281 = vmatprep.mubr.f32.mxu0 0.0
    %282 = vmatmul.mubr.f32.gmra.mxu0 %v143
    %v283 = vpop.f32.mrf.mxu0
    %v284 = vadd.f32 0.0, %v283
    %v285 = vpop.f32.mrf.mxu0
    %v286 = vadd.f32 0.0, %v285
    %287 = vmatprep.mubr.f32.mxu0 0.0
    %288 = vmatmul.mubr.f32.gmra.mxu0 %v146
    %v289 = vpop.f32.mrf.mxu0
    %v290 = vadd.f32 0.0, %v289
    %v291 = vpop.f32.mrf.mxu0
    %v292 = vadd.f32 0.0, %v291
    %293 = vmatprep.mubr.f32.mxu0 0.0
    %294 = vmatmul.mubr.f32.gmra.mxu0 %v149
    %v295 = vpop.f32.mrf.mxu0
    %v296 = vadd.f32 0.0, %v295
    %v297 = vpop.f32.mrf.mxu0
    %v298 = vadd.f32 0.0, %v297
    %299 = vmatprep.mubr.f32.mxu0 0.0
    %300 = vmatmul.mubr.f32.gmra.mxu0 %v152
    %v301 = vpop.f32.mrf.mxu0
    %v302 = vadd.f32 0.0, %v301
    %v303 = vpop.f32.mrf.mxu0
    %v304 = vadd.f32 0.0, %v303
    %305 = vmatprep.mubr.f32.mxu0 0.0
    %306 = vmatmul.mubr.f32.gmra.mxu0 %v155
    %v307 = vpop.f32.mrf.mxu0
    %v308 = vadd.f32 0.0, %v307
    %v309 = vpop.f32.mrf.mxu0
    %v310 = vadd.f32 0.0, %v309
    %311 = vmatprep.mubr.f32.mxu0 0.0
    %312 = vmatmul.mubr.f32.gmra.mxu0 %v158
    %v313 = vpop.f32.mrf.mxu0
    %v314 = vadd.f32 0.0, %v313
    %v315 = vpop.f32.mrf.mxu0
    %v316 = vadd.f32 0.0, %v315
    %317 = vmatprep.mubr.f32.mxu0 0.0
    %318 = vmatmul.mubr.f32.gmra.mxu0 %v161
    %v319 = vpop.f32.mrf.mxu0
    %v320 = vadd.f32 0.0, %v319
    %v321 = vpop.f32.mrf.mxu0
    %v322 = vadd.f32 0.0, %v321
    %323 = vdwg.mxu0
    %324 = vmatprep.subr.mxu0 0.0
    %325 = vmatpush1.msra.mxu0 0.0
    %326 = vmatprep.subr.mxu0 0.0
    %327 = vmatpush1.msra.mxu0 0.0
    %328 = vmatprep.subr.mxu0 0.0
    %329 = vmatpush1.msra.mxu0 0.0
    %330 = vmatprep.subr.mxu0 0.0
    %331 = vmatpush1.msra.mxu0 0.0
    %332 = vmatprep.subr.mxu0 0.0
    %333 = vmatpush1.msra.mxu0 0.0
    %334 = vmatprep.subr.mxu0 0.0
    %335 = vmatpush1.msra.mxu0 0.0
    %336 = vmatprep.subr.mxu0 0.0
    %337 = vmatpush1.msra.mxu0 0.0
    %338 = vmatprep.subr.mxu0 0.0
    %339 = vmatpush1.msra.mxu0 0.0
    %340 = vmatprep.subr.mxu0 0.0
    %341 = vmatpush1.msra.mxu0 0.0
    %342 = vmatprep.subr.mxu0 0.0
    %343 = vmatpush1.msra.mxu0 0.0
    %344 = vmatprep.subr.mxu0 0.0
    %345 = vmatpush1.msra.mxu0 0.0
    %346 = vmatprep.subr.mxu0 0.0
    %347 = vmatpush1.msra.mxu0 0.0
    %348 = vmatprep.subr.mxu0 0.0
    %349 = vmatpush1.msra.mxu0 %v113
    %350 = vmatprep.subr.mxu0 0.0
    %351 = vmatpush1.msra.mxu0 %v110
    %352 = vmatprep.subr.mxu0 0.0
    %353 = vmatpush1.msra.mxu0 %v107
    %354 = vmatprep.subr.mxu0 0.0
    %355 = vmatpush1.msra.mxu0 %v104
    %356 = vmatprep.subr.mxu0 0.0
    %357 = vmatpush2.msra.mxu0 0.0
    %358 = vmatprep.subr.mxu0 0.0
    %359 = vmatpush2.msra.mxu0 0.0
    %360 = vmatprep.subr.mxu0 0.0
    %361 = vmatpush2.msra.mxu0 0.0
    %362 = vmatprep.subr.mxu0 0.0
    %363 = vmatpush2.msra.mxu0 0.0
    %364 = vmatprep.subr.mxu0 0.0
    %365 = vmatpush2.msra.mxu0 0.0
    %366 = vmatprep.subr.mxu0 0.0
    %367 = vmatpush2.msra.mxu0 0.0
    %368 = vmatprep.subr.mxu0 0.0
    %369 = vmatpush2.msra.mxu0 0.0
    %370 = vmatprep.subr.mxu0 0.0
    %371 = vmatpush2.msra.mxu0 0.0
    %372 = vmatprep.subr.mxu0 0.0
    %373 = vmatpush2.msra.mxu0 0.0
    %374 = vmatprep.subr.mxu0 0.0
    %375 = vmatpush2.msra.mxu0 0.0
    %376 = vmatprep.subr.mxu0 0.0
    %377 = vmatpush2.msra.mxu0 0.0
    %378 = vmatprep.subr.mxu0 0.0
    %379 = vmatpush2.msra.mxu0 0.0
    %380 = vmatprep.subr.mxu0 0.0
    %381 = vmatpush2.msra.mxu0 0.0
    %382 = vmatprep.subr.mxu0 0.0
    %383 = vmatpush2.msra.mxu0 0.0
    %384 = vmatprep.subr.mxu0 0.0
    %385 = vmatpush2.msra.mxu0 0.0
    %386 = vmatprep.subr.mxu0 0.0
    %387 = vmatpush2.msra.mxu0 0.0
    %388 = vmatprep.mubr.f32.mxu0 0.0
    %389 = vmatmul.mubr.f32.gmra.mxu0 %v116
    %v390 = vpop.f32.mrf.mxu0
    %v391 = vadd.f32 0.0, %v390
    %v392 = vpop.f32.mrf.mxu0
    %393 = vmatprep.mubr.f32.mxu0 0.0
    %394 = vmatmul.mubr.f32.gmra.mxu0 %v119
    %v395 = vpop.f32.mrf.mxu0
    %v396 = vadd.f32 0.0, %v395
    %v397 = vpop.f32.mrf.mxu0
    %398 = vmatprep.mubr.f32.mxu0 0.0
    %399 = vmatmul.mubr.f32.gmra.mxu0 %v122
    %v400 = vpop.f32.mrf.mxu0
    %v401 = vadd.f32 0.0, %v400
    %v402 = vpop.f32.mrf.mxu0
    %403 = vmatprep.mubr.f32.mxu0 0.0
    %404 = vmatmul.mubr.f32.gmra.mxu0 %v125
    %v405 = vpop.f32.mrf.mxu0
    %v406 = vadd.f32 0.0, %v405
    %v407 = vpop.f32.mrf.mxu0
    %408 = vmatprep.mubr.f32.mxu0 0.0
    %409 = vmatmul.mubr.f32.gmra.mxu0 %v128
    %v410 = vpop.f32.mrf.mxu0
    %v411 = vadd.f32 0.0, %v410
    %v412 = vpop.f32.mrf.mxu0
    %413 = vmatprep.mubr.f32.mxu0 0.0
    %414 = vmatmul.mubr.f32.gmra.mxu0 %v131
    %v415 = vpop.f32.mrf.mxu0
    %v416 = vadd.f32 0.0, %v415
    %v417 = vpop.f32.mrf.mxu0
    %418 = vmatprep.mubr.f32.mxu0 0.0
    %419 = vmatmul.mubr.f32.gmra.mxu0 %v134
    %v420 = vpop.f32.mrf.mxu0
    %v421 = vadd.f32 0.0, %v420
    %v422 = vpop.f32.mrf.mxu0
    %423 = vmatprep.mubr.f32.mxu0 0.0
    %424 = vmatmul.mubr.f32.gmra.mxu0 %v137
    %v425 = vpop.f32.mrf.mxu0
    %v426 = vadd.f32 0.0, %v425
    %v427 = vpop.f32.mrf.mxu0
    %428 = vmatprep.mubr.f32.mxu0 0.0
    %429 = vmatmul.mubr.f32.gmra.mxu0 %v140
    %v430 = vpop.f32.mrf.mxu0
    %v431 = vadd.f32 0.0, %v430
    %v432 = vpop.f32.mrf.mxu0
    %433 = vmatprep.mubr.f32.mxu0 0.0
    %434 = vmatmul.mubr.f32.gmra.mxu0 %v143
    %v435 = vpop.f32.mrf.mxu0
    %v436 = vadd.f32 0.0, %v435
    %v437 = vpop.f32.mrf.mxu0
    %438 = vmatprep.mubr.f32.mxu0 0.0
    %439 = vmatmul.mubr.f32.gmra.mxu0 %v146
    %v440 = vpop.f32.mrf.mxu0
    %v441 = vadd.f32 0.0, %v440
    %v442 = vpop.f32.mrf.mxu0
    %443 = vmatprep.mubr.f32.mxu0 0.0
    %444 = vmatmul.mubr.f32.gmra.mxu0 %v149
    %v445 = vpop.f32.mrf.mxu0
    %v446 = vadd.f32 0.0, %v445
    %v447 = vpop.f32.mrf.mxu0
    %448 = vmatprep.mubr.f32.mxu0 0.0
    %449 = vmatmul.mubr.f32.gmra.mxu0 %v152
    %v450 = vpop.f32.mrf.mxu0
    %v451 = vadd.f32 0.0, %v450
    %v452 = vpop.f32.mrf.mxu0
    %453 = vmatprep.mubr.f32.mxu0 0.0
    %454 = vmatmul.mubr.f32.gmra.mxu0 %v155
    %v455 = vpop.f32.mrf.mxu0
    %v456 = vadd.f32 0.0, %v455
    %v457 = vpop.f32.mrf.mxu0
    %458 = vmatprep.mubr.f32.mxu0 0.0
    %459 = vmatmul.mubr.f32.gmra.mxu0 %v158
    %v460 = vpop.f32.mrf.mxu0
    %v461 = vadd.f32 0.0, %v460
    %v462 = vpop.f32.mrf.mxu0
    %463 = vmatprep.mubr.f32.mxu0 0.0
    %464 = vmatmul.mubr.f32.gmra.mxu0 %v161
    %v465 = vpop.f32.mrf.mxu0
    %v466 = vadd.f32 0.0, %v465
    %v467 = vpop.f32.mrf.mxu0
    %468 = vdwg.mxu0
    %v469 = vlaneseq
    %v470 = vand.u32 %v469, 127
    %vm471 = vcmp.eq.s32.totalorder %v470, 1
    %v472 = vsel %vm471, 1.0, %v391
    %v473 = vsel %vm471, 1.0, %v396
    %v474 = vsel %vm471, 1.0, %v401
    %v475 = vsel %vm471, 1.0, %v406
    %v476 = vsel %vm471, 1.0, %v411
    %v477 = vsel %vm471, 1.0, %v416
    %v478 = vsel %vm471, 1.0, %v421
    %v479 = vsel %vm471, 1.0, %v426
    %v480 = vsel %vm471, 1.0, %v431
    %v481 = vsel %vm471, 1.0, %v436
    %v482 = vsel %vm471, 1.0, %v441
    %v483 = vsel %vm471, 1.0, %v446
    %v484 = vsel %vm471, 1.0, %v451
    %v485 = vsel %vm471, 1.0, %v456
    %v486 = vsel %vm471, 1.0, %v461
    %v487 = vsel %vm471, 1.0, %v466
    %vm488 = vcmp.eq.s32.totalorder %v470, 0
    %v489 = vsel %vm488, 1.0, %v391
    %v490 = vsel %vm488, 1.0, %v396
    %v491 = vsel %vm488, 1.0, %v401
    %v492 = vsel %vm488, 1.0, %v406
    %v493 = vsel %vm488, 1.0, %v411
    %v494 = vsel %vm488, 1.0, %v416
    %v495 = vsel %vm488, 1.0, %v421
    %v496 = vsel %vm488, 1.0, %v426
    %v497 = vsel %vm488, 1.0, %v431
    %v498 = vsel %vm488, 1.0, %v436
    %v499 = vsel %vm488, 1.0, %v441
    %v500 = vsel %vm488, 1.0, %v446
    %v501 = vsel %vm488, 1.0, %v451
    %v502 = vsel %vm488, 1.0, %v456
    %v503 = vsel %vm488, 1.0, %v461
    %v504 = vsel %vm488, 1.0, %v466
    %505 = vmatprep.subr.mxu0 0.0
    %506 = vmatpush1.xpose.msra.mxu0 %v504
    %507 = vmatprep.subr.mxu0 0.0
    %508 = vmatpush1.xpose.msra.mxu0 %v503
    %509 = vmatprep.subr.mxu0 0.0
    %510 = vmatpush1.xpose.msra.mxu0 %v502
    %511 = vmatprep.subr.mxu0 0.0
    %512 = vmatpush1.xpose.msra.mxu0 %v501
    %513 = vmatprep.subr.mxu0 0.0
    %514 = vmatpush1.xpose.msra.mxu0 %v500
    %515 = vmatprep.subr.mxu0 0.0
    %516 = vmatpush1.xpose.msra.mxu0 %v499
    %517 = vmatprep.subr.mxu0 0.0
    %518 = vmatpush1.xpose.msra.mxu0 %v498
    %519 = vmatprep.subr.mxu0 0.0
    %520 = vmatpush1.xpose.msra.mxu0 %v497
    %521 = vmatprep.subr.mxu0 0.0
    %522 = vmatpush1.xpose.msra.mxu0 %v496
    %523 = vmatprep.subr.mxu0 0.0
    %524 = vmatpush1.xpose.msra.mxu0 %v495
    %525 = vmatprep.subr.mxu0 0.0
    %526 = vmatpush1.xpose.msra.mxu0 %v494
    %527 = vmatprep.subr.mxu0 0.0
    %528 = vmatpush1.xpose.msra.mxu0 %v493
    %529 = vmatprep.subr.mxu0 0.0
    %530 = vmatpush1.xpose.msra.mxu0 %v492
    %531 = vmatprep.subr.mxu0 0.0
    %532 = vmatpush1.xpose.msra.mxu0 %v491
    %533 = vmatprep.subr.mxu0 0.0
    %534 = vmatpush1.xpose.msra.mxu0 %v490
    %535 = vmatprep.subr.mxu0 0.0
    %536 = vmatpush1.xpose.msra.mxu0 %v489
    %537 = vmatprep.subr.mxu0 0.0
    %538 = vmatpush2.xpose.msra.mxu0 0.0
    %539 = vmatprep.subr.mxu0 0.0
    %540 = vmatpush2.xpose.msra.mxu0 0.0
    %541 = vmatprep.subr.mxu0 0.0
    %542 = vmatpush2.xpose.msra.mxu0 0.0
    %543 = vmatprep.subr.mxu0 0.0
    %544 = vmatpush2.xpose.msra.mxu0 0.0
    %545 = vmatprep.subr.mxu0 0.0
    %546 = vmatpush2.xpose.msra.mxu0 0.0
    %547 = vmatprep.subr.mxu0 0.0
    %548 = vmatpush2.xpose.msra.mxu0 0.0
    %549 = vmatprep.subr.mxu0 0.0
    %550 = vmatpush2.xpose.msra.mxu0 0.0
    %551 = vmatprep.subr.mxu0 0.0
    %552 = vmatpush2.xpose.msra.mxu0 0.0
    %553 = vmatprep.subr.mxu0 0.0
    %554 = vmatpush2.xpose.msra.mxu0 0.0
    %555 = vmatprep.subr.mxu0 0.0
    %556 = vmatpush2.xpose.msra.mxu0 0.0
    %557 = vmatprep.subr.mxu0 0.0
    %558 = vmatpush2.xpose.msra.mxu0 0.0
    %559 = vmatprep.subr.mxu0 0.0
    %560 = vmatpush2.xpose.msra.mxu0 0.0
    %561 = vmatprep.subr.mxu0 0.0
    %562 = vmatpush2.xpose.msra.mxu0 0.0
    %563 = vmatprep.subr.mxu0 0.0
    %564 = vmatpush2.xpose.msra.mxu0 0.0
    %565 = vmatprep.subr.mxu0 0.0
    %566 = vmatpush2.xpose.msra.mxu0 0.0
    %567 = vmatprep.subr.mxu0 0.0
    %568 = vmatpush2.xpose.msra.mxu0 0.0
    %569 = vmatprep.mubr.f32.mxu0 0.0
    %570 = vmatmul.mubr.f32.gmra.mxu0 %v472
    %v571 = vpop.f32.mrf.mxu0
    %v572 = vadd.f32 0.0, %v571
    %v573 = vpop.f32.mrf.mxu0
    %574 = vmatprep.mubr.f32.mxu0 0.0
    %575 = vmatmul.mubr.f32.gmra.mxu0 %v473
    %v576 = vpop.f32.mrf.mxu0
    %v577 = vadd.f32 0.0, %v576
    %v578 = vpop.f32.mrf.mxu0
    %579 = vmatprep.mubr.f32.mxu0 0.0
    %580 = vmatmul.mubr.f32.gmra.mxu0 %v474
    %v581 = vpop.f32.mrf.mxu0
    %v582 = vadd.f32 0.0, %v581
    %v583 = vpop.f32.mrf.mxu0
    %584 = vmatprep.mubr.f32.mxu0 0.0
    %585 = vmatmul.mubr.f32.gmra.mxu0 %v475
    %v586 = vpop.f32.mrf.mxu0
    %v587 = vadd.f32 0.0, %v586
    %v588 = vpop.f32.mrf.mxu0
    %589 = vmatprep.mubr.f32.mxu0 0.0
    %590 = vmatmul.mubr.f32.gmra.mxu0 %v476
    %v591 = vpop.f32.mrf.mxu0
    %v592 = vadd.f32 0.0, %v591
    %v593 = vpop.f32.mrf.mxu0
    %594 = vmatprep.mubr.f32.mxu0 0.0
    %595 = vmatmul.mubr.f32.gmra.mxu0 %v477
    %v596 = vpop.f32.mrf.mxu0
    %v597 = vadd.f32 0.0, %v596
    %v598 = vpop.f32.mrf.mxu0
    %599 = vmatprep.mubr.f32.mxu0 0.0
    %600 = vmatmul.mubr.f32.gmra.mxu0 %v478
    %v601 = vpop.f32.mrf.mxu0
    %v602 = vadd.f32 0.0, %v601
    %v603 = vpop.f32.mrf.mxu0
    %604 = vmatprep.mubr.f32.mxu0 0.0
    %605 = vmatmul.mubr.f32.gmra.mxu0 %v479
    %v606 = vpop.f32.mrf.mxu0
    %v607 = vadd.f32 0.0, %v606
    %v608 = vpop.f32.mrf.mxu0
    %609 = vmatprep.mubr.f32.mxu0 0.0
    %610 = vmatmul.mubr.f32.gmra.mxu0 %v480
    %v611 = vpop.f32.mrf.mxu0
    %v612 = vadd.f32 0.0, %v611
    %v613 = vpop.f32.mrf.mxu0
    %614 = vmatprep.mubr.f32.mxu0 0.0
    %615 = vmatmul.mubr.f32.gmra.mxu0 %v481
    %v616 = vpop.f32.mrf.mxu0
    %v617 = vadd.f32 0.0, %v616
    %v618 = vpop.f32.mrf.mxu0
    %619 = vmatprep.mubr.f32.mxu0 0.0
    %620 = vmatmul.mubr.f32.gmra.mxu0 %v482
    %v621 = vpop.f32.mrf.mxu0
    %v622 = vadd.f32 0.0, %v621
    %v623 = vpop.f32.mrf.mxu0
    %624 = vmatprep.mubr.f32.mxu0 0.0
    %625 = vmatmul.mubr.f32.gmra.mxu0 %v483
    %v626 = vpop.f32.mrf.mxu0
    %v627 = vadd.f32 0.0, %v626
    %v628 = vpop.f32.mrf.mxu0
    %629 = vmatprep.mubr.f32.mxu0 0.0
    %630 = vmatmul.mubr.f32.gmra.mxu0 %v484
    %v631 = vpop.f32.mrf.mxu0
    %v632 = vadd.f32 0.0, %v631
    %v633 = vpop.f32.mrf.mxu0
    %634 = vmatprep.mubr.f32.mxu0 0.0
    %635 = vmatmul.mubr.f32.gmra.mxu0 %v485
    %v636 = vpop.f32.mrf.mxu0
    %v637 = vadd.f32 0.0, %v636
    %v638 = vpop.f32.mrf.mxu0
    %639 = vmatprep.mubr.f32.mxu0 0.0
    %640 = vmatmul.mubr.f32.gmra.mxu0 %v486
    %v641 = vpop.f32.mrf.mxu0
    %v642 = vadd.f32 0.0, %v641
    %v643 = vpop.f32.mrf.mxu0
    %644 = vmatprep.mubr.f32.mxu0 0.0
    %645 = vmatmul.mubr.f32.gmra.mxu0 %v487
    %v646 = vpop.f32.mrf.mxu0
    %v647 = vadd.f32 0.0, %v646
    %v648 = vpop.f32.mrf.mxu0
    %649 = vdwg.mxu0
    %v650 = vmul.f32 %v572, 0.2
    %v651 = vmul.f32 %v577, 0.2
    %v652 = vmul.f32 %v582, 0.2
    %v653 = vmul.f32 %v587, 0.2
    %v654 = vmul.f32 %v592, 0.2
    %v655 = vmul.f32 %v597, 0.2
    %v656 = vmul.f32 %v602, 0.2
    %v657 = vmul.f32 %v607, 0.2
    %v658 = vmul.f32 %v612, 0.2
    %v659 = vmul.f32 %v617, 0.2
    %v660 = vmul.f32 %v622, 0.2
    %v661 = vmul.f32 %v627, 0.2
    %v662 = vmul.f32 %v632, 0.2
    %v663 = vmul.f32 %v637, 0.2
    %v664 = vmul.f32 %v642, 0.2
    %v665 = vmul.f32 %v647, 0.2
    %v666 = vmax.f32 %v572, %v650
    %v667 = vmax.f32 %v577, %v651
    %v668 = vmax.f32 %v582, %v652
    %v669 = vmax.f32 %v587, %v653
    %v670 = vmax.f32 %v592, %v654
    %v671 = vmax.f32 %v597, %v655
    %v672 = vmax.f32 %v602, %v656
    %v673 = vmax.f32 %v607, %v657
    %v674 = vmax.f32 %v612, %v658
    %v675 = vmax.f32 %v617, %v659
    %v676 = vmax.f32 %v622, %v660
    %v677 = vmax.f32 %v627, %v661
    %v678 = vmax.f32 %v632, %v662
    %v679 = vmax.f32 %v637, %v663
    %v680 = vmax.f32 %v642, %v664
    %v681 = vmax.f32 %v647, %v665
    %v682 = vadd.f32 %v666, %v70
    %v683 = vadd.f32 %v667, %v71
    %v684 = vadd.f32 %v668, %v72
    %v685 = vadd.f32 %v669, %v73
    %v686 = vadd.f32 %v670, %v74
    %v687 = vadd.f32 %v671, %v75
    %v688 = vadd.f32 %v672, %v76
    %v689 = vadd.f32 %v673, %v77
    %v690 = vadd.f32 %v674, %v78
    %v691 = vadd.f32 %v675, %v79
    %v692 = vadd.f32 %v676, %v80
    %v693 = vadd.f32 %v677, %v81
    %v694 = vadd.f32 %v678, %v82
    %v695 = vadd.f32 %v679, %v83
    %v696 = vadd.f32 %v680, %v84
    %v697 = vadd.f32 %v681, %v85
    %698 = vmax.xlane.f32.xlu0 %v682
    %v699 = vpop.xlane.xlu0 %698
    %700 = vmax.xlane.f32.xlu0 %v683
    %v701 = vpop.xlane.xlu0 %700
    %702 = vmax.xlane.f32.xlu0 %v684
    %v703 = vpop.xlane.xlu0 %702
    %704 = vmax.xlane.f32.xlu0 %v685
    %v705 = vpop.xlane.xlu0 %704
    %706 = vmax.xlane.f32.xlu0 %v686
    %v707 = vpop.xlane.xlu0 %706
    %708 = vmax.xlane.f32.xlu0 %v687
    %v709 = vpop.xlane.xlu0 %708
    %710 = vmax.xlane.f32.xlu0 %v688
    %v711 = vpop.xlane.xlu0 %710
    %712 = vmax.xlane.f32.xlu0 %v689
    %v713 = vpop.xlane.xlu0 %712
    %714 = vmax.xlane.f32.xlu0 %v690
    %v715 = vpop.xlane.xlu0 %714
    %716 = vmax.xlane.f32.xlu0 %v691
    %v717 = vpop.xlane.xlu0 %716
    %718 = vmax.xlane.f32.xlu0 %v692
    %v719 = vpop.xlane.xlu0 %718
    %720 = vmax.xlane.f32.xlu0 %v693
    %v721 = vpop.xlane.xlu0 %720
    %722 = vmax.xlane.f32.xlu0 %v694
    %v723 = vpop.xlane.xlu0 %722
    %724 = vmax.xlane.f32.xlu0 %v695
    %v725 = vpop.xlane.xlu0 %724
    %726 = vmax.xlane.f32.xlu0 %v696
    %v727 = vpop.xlane.xlu0 %726
    %728 = vmax.xlane.f32.xlu0 %v697
    %v729 = vpop.xlane.xlu0 %728
    %v730 = vsub.f32 %v682, %v699
    %v731 = vsub.f32 %v683, %v701
    %v732 = vsub.f32 %v684, %v703
    %v733 = vsub.f32 %v685, %v705
    %v734 = vsub.f32 %v686, %v707
    %v735 = vsub.f32 %v687, %v709
    %v736 = vsub.f32 %v688, %v711
    %v737 = vsub.f32 %v689, %v713
    %v738 = vsub.f32 %v690, %v715
    %v739 = vsub.f32 %v691, %v717
    %v740 = vsub.f32 %v692, %v719
    %v741 = vsub.f32 %v693, %v721
    %v742 = vsub.f32 %v694, %v723
    %v743 = vsub.f32 %v695, %v725
    %v744 = vsub.f32 %v696, %v727
    %v745 = vsub.f32 %v697, %v729
    %v746 = vmul.f32 %v730, 1.442695
    %v747 = vpow.pop %v746
    %v748 = vmul.f32 %v731, 1.442695
    %v749 = vpow.pop %v748
    %v750 = vmul.f32 %v732, 1.442695
    %v751 = vpow.pop %v750
    %v752 = vmul.f32 %v733, 1.442695
    %v753 = vpow.pop %v752
    %v754 = vmul.f32 %v734, 1.442695
    %v755 = vpow.pop %v754
    %v756 = vmul.f32 %v735, 1.442695
    %v757 = vpow.pop %v756
    %v758 = vmul.f32 %v736, 1.442695
    %v759 = vpow.pop %v758
    %v760 = vmul.f32 %v737, 1.442695
    %v761 = vpow.pop %v760
    %v762 = vmul.f32 %v738, 1.442695
    %v763 = vpow.pop %v762
    %v764 = vmul.f32 %v739, 1.442695
    %v765 = vpow.pop %v764
    %v766 = vmul.f32 %v740, 1.442695
    %v767 = vpow.pop %v766
    %v768 = vmul.f32 %v741, 1.442695
    %v769 = vpow.pop %v768
    %v770 = vmul.f32 %v742, 1.442695
    %v771 = vpow.pop %v770
    %v772 = vmul.f32 %v743, 1.442695
    %v773 = vpow.pop %v772
    %v774 = vmul.f32 %v744, 1.442695
    %v775 = vpow.pop %v774
    %v776 = vmul.f32 %v745, 1.442695
    %v777 = vpow.pop %v776
    %778 = vadd.xlane.f32.xlu0 %v747
    %v779 = vpop.xlane.xlu0 %778
    %780 = vadd.xlane.f32.xlu0 %v749
    %v781 = vpop.xlane.xlu0 %780
    %782 = vadd.xlane.f32.xlu0 %v751
    %v783 = vpop.xlane.xlu0 %782
    %784 = vadd.xlane.f32.xlu0 %v753
    %v785 = vpop.xlane.xlu0 %784
    %786 = vadd.xlane.f32.xlu0 %v755
    %v787 = vpop.xlane.xlu0 %786
    %788 = vadd.xlane.f32.xlu0 %v757
    %v789 = vpop.xlane.xlu0 %788
    %790 = vadd.xlane.f32.xlu0 %v759
    %v791 = vpop.xlane.xlu0 %790
    %792 = vadd.xlane.f32.xlu0 %v761
    %v793 = vpop.xlane.xlu0 %792
    %794 = vadd.xlane.f32.xlu0 %v763
    %v795 = vpop.xlane.xlu0 %794
    %796 = vadd.xlane.f32.xlu0 %v765
    %v797 = vpop.xlane.xlu0 %796
    %798 = vadd.xlane.f32.xlu0 %v767
    %v799 = vpop.xlane.xlu0 %798
    %800 = vadd.xlane.f32.xlu0 %v769
    %v801 = vpop.xlane.xlu0 %800
    %802 = vadd.xlane.f32.xlu0 %v771
    %v803 = vpop.xlane.xlu0 %802
    %804 = vadd.xlane.f32.xlu0 %v773
    %v805 = vpop.xlane.xlu0 %804
    %806 = vadd.xlane.f32.xlu0 %v775
    %v807 = vpop.xlane.xlu0 %806
    %808 = vadd.xlane.f32.xlu0 %v777
    %v809 = vpop.xlane.xlu0 %808
    %v810 = vmax.f32 %v779, 1e-30
    %v811 = vmax.f32 %v781, 1e-30
    %v812 = vmax.f32 %v783, 1e-30
    %v813 = vmax.f32 %v785, 1e-30
    %v814 = vmax.f32 %v787, 1e-30
    %v815 = vmax.f32 %v789, 1e-30
    %v816 = vmax.f32 %v791, 1e-30
    %v817 = vmax.f32 %v793, 1e-30
    %v818 = vmax.f32 %v795, 1e-30
    %v819 = vmax.f32 %v797, 1e-30
    %v820 = vmax.f32 %v799, 1e-30
    %v821 = vmax.f32 %v801, 1e-30
    %v822 = vmax.f32 %v803, 1e-30
    %v823 = vmax.f32 %v805, 1e-30
    %v824 = vmax.f32 %v807, 1e-30
    %v825 = vmax.f32 %v809, 1e-30
    %826 = vmatprep.subr.mxu0 %v322
    %827 = vmatpush1.msra.mxu0 %v320
    %828 = vmatprep.subr.mxu0 %v316
    %829 = vmatpush1.msra.mxu0 %v314
    %830 = vmatprep.subr.mxu0 %v310
    %831 = vmatpush1.msra.mxu0 %v308
    %832 = vmatprep.subr.mxu0 %v304
    %833 = vmatpush1.msra.mxu0 %v302
    %834 = vmatprep.subr.mxu0 %v298
    %835 = vmatpush1.msra.mxu0 %v296
    %836 = vmatprep.subr.mxu0 %v292
    %837 = vmatpush1.msra.mxu0 %v290
    %838 = vmatprep.subr.mxu0 %v286
    %839 = vmatpush1.msra.mxu0 %v284
    %840 = vmatprep.subr.mxu0 %v280
    %841 = vmatpush1.msra.mxu0 %v278
    %842 = vmatprep.subr.mxu0 %v274
    %843 = vmatpush1.msra.mxu0 %v272
    %844 = vmatprep.subr.mxu0 %v268
    %845 = vmatpush1.msra.mxu0 %v266
    %846 = vmatprep.subr.mxu0 %v262
    %847 = vmatpush1.msra.mxu0 %v260
    %848 = vmatprep.subr.mxu0 %v256
    %849 = vmatpush1.msra.mxu0 %v254
    %850 = vmatprep.subr.mxu0 %v250
    %851 = vmatpush1.msra.mxu0 %v248
    %852 = vmatprep.subr.mxu0 %v244
    %853 = vmatpush1.msra.mxu0 %v242
    %854 = vmatprep.subr.mxu0 %v238
    %855 = vmatpush1.msra.mxu0 %v236
    %856 = vmatprep.subr.mxu0 %v232
    %857 = vmatpush1.msra.mxu0 %v230
    %858 = vmatprep.subr.mxu0 0.0
    %859 = vmatpush2.msra.mxu0 0.0
    %860 = vmatprep.subr.mxu0 0.0
    %861 = vmatpush2.msra.mxu0 0.0
    %862 = vmatprep.subr.mxu0 0.0
    %863 = vmatpush2.msra.mxu0 0.0
    %864 = vmatprep.subr.mxu0 0.0
    %865 = vmatpush2.msra.mxu0 0.0
    %866 = vmatprep.subr.mxu0 0.0
    %867 = vmatpush2.msra.mxu0 0.0
    %868 = vmatprep.subr.mxu0 0.0
    %869 = vmatpush2.msra.mxu0 0.0
    %870 = vmatprep.subr.mxu0 0.0
    %871 = vmatpush2.msra.mxu0 0.0
    %872 = vmatprep.subr.mxu0 0.0
    %873 = vmatpush2.msra.mxu0 0.0
    %874 = vmatprep.subr.mxu0 0.0
    %875 = vmatpush2.msra.mxu0 0.0
    %876 = vmatprep.subr.mxu0 0.0
    %877 = vmatpush2.msra.mxu0 0.0
    %878 = vmatprep.subr.mxu0 0.0
    %879 = vmatpush2.msra.mxu0 0.0
    %880 = vmatprep.subr.mxu0 0.0
    %881 = vmatpush2.msra.mxu0 0.0
    %882 = vmatprep.subr.mxu0 0.0
    %883 = vmatpush2.msra.mxu0 0.0
    %884 = vmatprep.subr.mxu0 0.0
    %885 = vmatpush2.msra.mxu0 0.0
    %886 = vmatprep.subr.mxu0 0.0
    %887 = vmatpush2.msra.mxu0 0.0
    %888 = vmatprep.subr.mxu0 0.0
    %889 = vmatpush2.msra.mxu0 0.0
    %890 = vmatprep.mubr.f32.mxu0 0.0
    %891 = vmatmul.mubr.f32.gmra.mxu0 %v747
    %v892 = vpop.f32.mrf.mxu0
    %v893 = vadd.f32 0.0, %v892
    %v894 = vpop.f32.mrf.mxu0
    %v895 = vadd.f32 0.0, %v894
    %896 = vmatprep.mubr.f32.mxu0 0.0
    %897 = vmatmul.mubr.f32.gmra.mxu0 %v749
    %v898 = vpop.f32.mrf.mxu0
    %v899 = vadd.f32 0.0, %v898
    %v900 = vpop.f32.mrf.mxu0
    %v901 = vadd.f32 0.0, %v900
    %902 = vmatprep.mubr.f32.mxu0 0.0
    %903 = vmatmul.mubr.f32.gmra.mxu0 %v751
    %v904 = vpop.f32.mrf.mxu0
    %v905 = vadd.f32 0.0, %v904
    %v906 = vpop.f32.mrf.mxu0
    %v907 = vadd.f32 0.0, %v906
    %908 = vmatprep.mubr.f32.mxu0 0.0
    %909 = vmatmul.mubr.f32.gmra.mxu0 %v753
    %v910 = vpop.f32.mrf.mxu0
    %v911 = vadd.f32 0.0, %v910
    %v912 = vpop.f32.mrf.mxu0
    %v913 = vadd.f32 0.0, %v912
    %914 = vmatprep.mubr.f32.mxu0 0.0
    %915 = vmatmul.mubr.f32.gmra.mxu0 %v755
    %v916 = vpop.f32.mrf.mxu0
    %v917 = vadd.f32 0.0, %v916
    %v918 = vpop.f32.mrf.mxu0
    %v919 = vadd.f32 0.0, %v918
    %920 = vmatprep.mubr.f32.mxu0 0.0
    %921 = vmatmul.mubr.f32.gmra.mxu0 %v757
    %v922 = vpop.f32.mrf.mxu0
    %v923 = vadd.f32 0.0, %v922
    %v924 = vpop.f32.mrf.mxu0
    %v925 = vadd.f32 0.0, %v924
    %926 = vmatprep.mubr.f32.mxu0 0.0
    %927 = vmatmul.mubr.f32.gmra.mxu0 %v759
    %v928 = vpop.f32.mrf.mxu0
    %v929 = vadd.f32 0.0, %v928
    %v930 = vpop.f32.mrf.mxu0
    %v931 = vadd.f32 0.0, %v930
    %932 = vmatprep.mubr.f32.mxu0 0.0
    %933 = vmatmul.mubr.f32.gmra.mxu0 %v761
    %v934 = vpop.f32.mrf.mxu0
    %v935 = vadd.f32 0.0, %v934
    %v936 = vpop.f32.mrf.mxu0
    %v937 = vadd.f32 0.0, %v936
    %938 = vmatprep.mubr.f32.mxu0 0.0
    %939 = vmatmul.mubr.f32.gmra.mxu0 %v763
    %v940 = vpop.f32.mrf.mxu0
    %v941 = vadd.f32 0.0, %v940
    %v942 = vpop.f32.mrf.mxu0
    %v943 = vadd.f32 0.0, %v942
    %944 = vmatprep.mubr.f32.mxu0 0.0
    %945 = vmatmul.mubr.f32.gmra.mxu0 %v765
    %v946 = vpop.f32.mrf.mxu0
    %v947 = vadd.f32 0.0, %v946
    %v948 = vpop.f32.mrf.mxu0
    %v949 = vadd.f32 0.0, %v948
    %950 = vmatprep.mubr.f32.mxu0 0.0
    %951 = vmatmul.mubr.f32.gmra.mxu0 %v767
    %v952 = vpop.f32.mrf.mxu0
    %v953 = vadd.f32 0.0, %v952
    %v954 = vpop.f32.mrf.mxu0
    %v955 = vadd.f32 0.0, %v954
    %956 = vmatprep.mubr.f32.mxu0 0.0
    %957 = vmatmul.mubr.f32.gmra.mxu0 %v769
    %v958 = vpop.f32.mrf.mxu0
    %v959 = vadd.f32 0.0, %v958
    %v960 = vpop.f32.mrf.mxu0
    %v961 = vadd.f32 0.0, %v960
    %962 = vmatprep.mubr.f32.mxu0 0.0
    %963 = vmatmul.mubr.f32.gmra.mxu0 %v771
    %v964 = vpop.f32.mrf.mxu0
    %v965 = vadd.f32 0.0, %v964
    %v966 = vpop.f32.mrf.mxu0
    %v967 = vadd.f32 0.0, %v966
    %968 = vmatprep.mubr.f32.mxu0 0.0
    %969 = vmatmul.mubr.f32.gmra.mxu0 %v773
    %v970 = vpop.f32.mrf.mxu0
    %v971 = vadd.f32 0.0, %v970
    %v972 = vpop.f32.mrf.mxu0
    %v973 = vadd.f32 0.0, %v972
    %974 = vmatprep.mubr.f32.mxu0 0.0
    %975 = vmatmul.mubr.f32.gmra.mxu0 %v775
    %v976 = vpop.f32.mrf.mxu0
    %v977 = vadd.f32 0.0, %v976
    %v978 = vpop.f32.mrf.mxu0
    %v979 = vadd.f32 0.0, %v978
    %980 = vmatprep.mubr.f32.mxu0 0.0
    %981 = vmatmul.mubr.f32.gmra.mxu0 %v777
    %v982 = vpop.f32.mrf.mxu0
    %v983 = vadd.f32 0.0, %v982
    %v984 = vpop.f32.mrf.mxu0
    %v985 = vadd.f32 0.0, %v984
    %986 = vdwg.mxu0
    %v987 = vrcp.pop %v810
    %v988 = vmul.f32 1.0, %v987
    %v989 = vrcp.pop %v811
    %v990 = vmul.f32 1.0, %v989
    %v991 = vrcp.pop %v812
    %v992 = vmul.f32 1.0, %v991
    %v993 = vrcp.pop %v813
    %v994 = vmul.f32 1.0, %v993
    %v995 = vrcp.pop %v814
    %v996 = vmul.f32 1.0, %v995
    %v997 = vrcp.pop %v815
    %v998 = vmul.f32 1.0, %v997
    %v999 = vrcp.pop %v816
    %v1000 = vmul.f32 1.0, %v999
    %v1001 = vrcp.pop %v817
    %v1002 = vmul.f32 1.0, %v1001
    %v1003 = vrcp.pop %v818
    %v1004 = vmul.f32 1.0, %v1003
    %v1005 = vrcp.pop %v819
    %v1006 = vmul.f32 1.0, %v1005
    %v1007 = vrcp.pop %v820
    %v1008 = vmul.f32 1.0, %v1007
    %v1009 = vrcp.pop %v821
    %v1010 = vmul.f32 1.0, %v1009
    %v1011 = vrcp.pop %v822
    %v1012 = vmul.f32 1.0, %v1011
    %v1013 = vrcp.pop %v823
    %v1014 = vmul.f32 1.0, %v1013
    %v1015 = vrcp.pop %v824
    %v1016 = vmul.f32 1.0, %v1015
    %v1017 = vrcp.pop %v825
    %v1018 = vmul.f32 1.0, %v1017
    %v1019 = vmul.f32 %v893, %v988
    %v1020 = vmul.f32 %v895, %v988
    %v1021 = vmul.f32 %v899, %v990
    %v1022 = vmul.f32 %v901, %v990
    %v1023 = vmul.f32 %v905, %v992
    %v1024 = vmul.f32 %v907, %v992
    %v1025 = vmul.f32 %v911, %v994
    %v1026 = vmul.f32 %v913, %v994
    %v1027 = vmul.f32 %v917, %v996
    %v1028 = vmul.f32 %v919, %v996
    %v1029 = vmul.f32 %v923, %v998
    %v1030 = vmul.f32 %v925, %v998
    %v1031 = vmul.f32 %v929, %v1000
    %v1032 = vmul.f32 %v931, %v1000
    %v1033 = vmul.f32 %v935, %v1002
    %v1034 = vmul.f32 %v937, %v1002
    %v1035 = vmul.f32 %v941, %v1004
    %v1036 = vmul.f32 %v943, %v1004
    %v1037 = vmul.f32 %v947, %v1006
    %v1038 = vmul.f32 %v949, %v1006
    %v1039 = vmul.f32 %v953, %v1008
    %v1040 = vmul.f32 %v955, %v1008
    %v1041 = vmul.f32 %v959, %v1010
    %v1042 = vmul.f32 %v961, %v1010
    %v1043 = vmul.f32 %v965, %v1012
    %v1044 = vmul.f32 %v967, %v1012
    %v1045 = vmul.f32 %v971, %v1014
    %v1046 = vmul.f32 %v973, %v1014
    %v1047 = vmul.f32 %v977, %v1016
    %v1048 = vmul.f32 %v979, %v1016
    %v1049 = vmul.f32 %v983, %v1018
    %v1050 = vmul.f32 %v985, %v1018
    %v1051 = vld [vmem:[%s3] sm:$0x3]
    %v1053 = vlaneseq
    %v1054 = vshrl.u32 %v1053, 7
    %v1055 = vsub.s32 0, %v1054
    %v1056 = vrot.slane %v1051, %v1055
    %v1057 = vlaneseq
    %v1058 = vshrl.u32 %v1057, 7
    %v1059 = vsub.s32 1, %v1058
    %v1060 = vrot.slane %v1051, %v1059
    %v1063 = vadd.f32 %v1019, %v1056
    %v1064 = vadd.f32 %v1020, %v1060
    %v1065 = vadd.f32 %v1021, %v1056
    %v1066 = vadd.f32 %v1022, %v1060
    %v1067 = vadd.f32 %v1023, %v1056
    %v1068 = vadd.f32 %v1024, %v1060
    %v1069 = vadd.f32 %v1025, %v1056
    %v1070 = vadd.f32 %v1026, %v1060
    %v1071 = vadd.f32 %v1027, %v1056
    %v1072 = vadd.f32 %v1028, %v1060
    %v1073 = vadd.f32 %v1029, %v1056
    %v1074 = vadd.f32 %v1030, %v1060
    %v1075 = vadd.f32 %v1031, %v1056
    %v1076 = vadd.f32 %v1032, %v1060
    %v1077 = vadd.f32 %v1033, %v1056
    %v1078 = vadd.f32 %v1034, %v1060
    %v1079 = vadd.f32 %v1035, %v1056
    %v1080 = vadd.f32 %v1036, %v1060
    %v1081 = vadd.f32 %v1037, %v1056
    %v1082 = vadd.f32 %v1038, %v1060
    %v1083 = vadd.f32 %v1039, %v1056
    %v1084 = vadd.f32 %v1040, %v1060
    %v1085 = vadd.f32 %v1041, %v1056
    %v1086 = vadd.f32 %v1042, %v1060
    %v1087 = vadd.f32 %v1043, %v1056
    %v1088 = vadd.f32 %v1044, %v1060
    %v1089 = vadd.f32 %v1045, %v1056
    %v1090 = vadd.f32 %v1046, %v1060
    %v1091 = vadd.f32 %v1047, %v1056
    %v1092 = vadd.f32 %v1048, %v1060
    %v1093 = vadd.f32 %v1049, %v1056
    %v1094 = vadd.f32 %v1050, %v1060
    %v1095 = vmul.f32 %v1063, 0.01
    %v1096 = vmul.f32 %v1064, 0.01
    %v1097 = vmul.f32 %v1065, 0.01
    %v1098 = vmul.f32 %v1066, 0.01
    %v1099 = vmul.f32 %v1067, 0.01
    %v1100 = vmul.f32 %v1068, 0.01
    %v1101 = vmul.f32 %v1069, 0.01
    %v1102 = vmul.f32 %v1070, 0.01
    %v1103 = vmul.f32 %v1071, 0.01
    %v1104 = vmul.f32 %v1072, 0.01
    %v1105 = vmul.f32 %v1073, 0.01
    %v1106 = vmul.f32 %v1074, 0.01
    %v1107 = vmul.f32 %v1075, 0.01
    %v1108 = vmul.f32 %v1076, 0.01
    %v1109 = vmul.f32 %v1077, 0.01
    %v1110 = vmul.f32 %v1078, 0.01
    %v1111 = vmul.f32 %v1079, 0.01
    %v1112 = vmul.f32 %v1080, 0.01
    %v1113 = vmul.f32 %v1081, 0.01
    %v1114 = vmul.f32 %v1082, 0.01
    %v1115 = vmul.f32 %v1083, 0.01
    %v1116 = vmul.f32 %v1084, 0.01
    %v1117 = vmul.f32 %v1085, 0.01
    %v1118 = vmul.f32 %v1086, 0.01
    %v1119 = vmul.f32 %v1087, 0.01
    %v1120 = vmul.f32 %v1088, 0.01
    %v1121 = vmul.f32 %v1089, 0.01
    %v1122 = vmul.f32 %v1090, 0.01
    %v1123 = vmul.f32 %v1091, 0.01
    %v1124 = vmul.f32 %v1092, 0.01
    %v1125 = vmul.f32 %v1093, 0.01
    %v1126 = vmul.f32 %v1094, 0.01
    %v1127 = vmax.f32 %v1063, %v1095
    %v1128 = vmax.f32 %v1064, %v1096
    %v1129 = vmax.f32 %v1065, %v1097
    %v1130 = vmax.f32 %v1066, %v1098
    %v1131 = vmax.f32 %v1067, %v1099
    %v1132 = vmax.f32 %v1068, %v1100
    %v1133 = vmax.f32 %v1069, %v1101
    %v1134 = vmax.f32 %v1070, %v1102
    %v1135 = vmax.f32 %v1071, %v1103
    %v1136 = vmax.f32 %v1072, %v1104
    %v1137 = vmax.f32 %v1073, %v1105
    %v1138 = vmax.f32 %v1074, %v1106
    %v1139 = vmax.f32 %v1075, %v1107
    %v1140 = vmax.f32 %v1076, %v1108
    %v1141 = vmax.f32 %v1077, %v1109
    %v1142 = vmax.f32 %v1078, %v1110
    %v1143 = vmax.f32 %v1079, %v1111
    %v1144 = vmax.f32 %v1080, %v1112
    %v1145 = vmax.f32 %v1081, %v1113
    %v1146 = vmax.f32 %v1082, %v1114
    %v1147 = vmax.f32 %v1083, %v1115
    %v1148 = vmax.f32 %v1084, %v1116
    %v1149 = vmax.f32 %v1085, %v1117
    %v1150 = vmax.f32 %v1086, %v1118
    %v1151 = vmax.f32 %v1087, %v1119
    %v1152 = vmax.f32 %v1088, %v1120
    %v1153 = vmax.f32 %v1089, %v1121
    %v1154 = vmax.f32 %v1090, %v1122
    %v1155 = vmax.f32 %v1091, %v1123
    %v1156 = vmax.f32 %v1092, %v1124
    %v1157 = vmax.f32 %v1093, %v1125
    %v1158 = vmax.f32 %v1094, %v1126
    %v1159 = vld [vmem:[#allocation4] sm:$0xff]
    %v1160 = vld [vmem:[#allocation4 + $0x8] sm:$0xff]
    %v1161 = vld [vmem:[#allocation4 + $0x10] sm:$0xff]
    %v1162 = vld [vmem:[#allocation4 + $0x18] sm:$0xff]
    %v1163 = vld [vmem:[#allocation4 + $0x20] sm:$0xff]
    %v1164 = vld [vmem:[#allocation4 + $0x28] sm:$0xff]
    %v1165 = vld [vmem:[#allocation4 + $0x30] sm:$0xff]
    %v1166 = vld [vmem:[#allocation4 + $0x38] sm:$0xff]
    %v1167 = vld [vmem:[#allocation4 + $0x40] sm:$0xff]
    %v1168 = vld [vmem:[#allocation4 + $0x48] sm:$0xff]
    %v1169 = vld [vmem:[#allocation4 + $0x50] sm:$0xff]
    %v1170 = vld [vmem:[#allocation4 + $0x58] sm:$0xff]
    %v1171 = vld [vmem:[#allocation4 + $0x60] sm:$0xff]
    %v1172 = vld [vmem:[#allocation4 + $0x68] sm:$0xff]
    %v1173 = vld [vmem:[#allocation4 + $0x70] sm:$0xff]
    %v1174 = vld [vmem:[#allocation4 + $0x78] sm:$0xff]
    %v1175 = vld [vmem:[#allocation4 + $0x80] sm:$0xff]
    %v1176 = vld [vmem:[#allocation4 + $0x88] sm:$0xff]
    %v1177 = vld [vmem:[#allocation4 + $0x90] sm:$0xff]
    %v1178 = vld [vmem:[#allocation4 + $0x98] sm:$0xff]
    %v1179 = vld [vmem:[#allocation4 + $0xa0] sm:$0xff]
    %v1180 = vld [vmem:[#allocation4 + $0xa8] sm:$0xff]
    %v1181 = vld [vmem:[#allocation4 + $0xb0] sm:$0xff]
    %v1182 = vld [vmem:[#allocation4 + $0xb8] sm:$0xff]
    %v1183 = vld [vmem:[#allocation4 + $0xc0] sm:$0xff]
    %v1184 = vld [vmem:[#allocation4 + $0xc8] sm:$0xff]
    %v1185 = vld [vmem:[#allocation4 + $0xd0] sm:$0xff]
    %v1186 = vld [vmem:[#allocation4 + $0xd8] sm:$0xff]
    %v1187 = vld [vmem:[#allocation4 + $0xe0] sm:$0xff]
    %v1188 = vld [vmem:[#allocation4 + $0xe8] sm:$0xff]
    %v1189 = vld [vmem:[#allocation4 + $0xf0] sm:$0xff]
    %v1190 = vld [vmem:[#allocation4 + $0xf8] sm:$0xff]
    %v1191 = vld [vmem:[#allocation4 + $0x100] sm:$0xff]
    %v1192 = vld [vmem:[#allocation4 + $0x108] sm:$0xff]
    %v1193 = vld [vmem:[#allocation4 + $0x110] sm:$0xff]
    %v1194 = vld [vmem:[#allocation4 + $0x118] sm:$0xff]
    %v1195 = vld [vmem:[#allocation4 + $0x120] sm:$0xff]
    %v1196 = vld [vmem:[#allocation4 + $0x128] sm:$0xff]
    %v1197 = vld [vmem:[#allocation4 + $0x130] sm:$0xff]
    %v1198 = vld [vmem:[#allocation4 + $0x138] sm:$0xff]
    %v1199 = vld [vmem:[#allocation4 + $0x140] sm:$0xff]
    %v1200 = vld [vmem:[#allocation4 + $0x148] sm:$0xff]
    %v1201 = vld [vmem:[#allocation4 + $0x150] sm:$0xff]
    %v1202 = vld [vmem:[#allocation4 + $0x158] sm:$0xff]
    %v1203 = vld [vmem:[#allocation4 + $0x160] sm:$0xff]
    %v1204 = vld [vmem:[#allocation4 + $0x168] sm:$0xff]
    %v1205 = vld [vmem:[#allocation4 + $0x170] sm:$0xff]
    %v1206 = vld [vmem:[#allocation4 + $0x178] sm:$0xff]
    %v1207 = vld [vmem:[#allocation4 + $0x180] sm:$0xff]
    %v1208 = vld [vmem:[#allocation4 + $0x188] sm:$0xff]
    %v1209 = vld [vmem:[#allocation4 + $0x190] sm:$0xff]
    %v1210 = vld [vmem:[#allocation4 + $0x198] sm:$0xff]
    %v1211 = vld [vmem:[#allocation4 + $0x1a0] sm:$0xff]
    %v1212 = vld [vmem:[#allocation4 + $0x1a8] sm:$0xff]
    %v1213 = vld [vmem:[#allocation4 + $0x1b0] sm:$0xff]
    %v1214 = vld [vmem:[#allocation4 + $0x1b8] sm:$0xff]
    %v1215 = vld [vmem:[#allocation4 + $0x1c0] sm:$0xff]
    %v1216 = vld [vmem:[#allocation4 + $0x1c8] sm:$0xff]
    %v1217 = vld [vmem:[#allocation4 + $0x1d0] sm:$0xff]
    %v1218 = vld [vmem:[#allocation4 + $0x1d8] sm:$0xff]
    %v1219 = vld [vmem:[#allocation4 + $0x1e0] sm:$0xff]
    %v1220 = vld [vmem:[#allocation4 + $0x1e8] sm:$0xff]
    %v1221 = vld [vmem:[#allocation4 + $0x1f0] sm:$0xff]
    %v1222 = vld [vmem:[#allocation4 + $0x1f8] sm:$0xff]
    %1223 = vmatprep.subr.mxu0 %v1190
    %1224 = vmatpush1.msra.mxu0 %v1189
    %1225 = vmatprep.subr.mxu0 %v1188
    %1226 = vmatpush1.msra.mxu0 %v1187
    %1227 = vmatprep.subr.mxu0 %v1186
    %1228 = vmatpush1.msra.mxu0 %v1185
    %1229 = vmatprep.subr.mxu0 %v1184
    %1230 = vmatpush1.msra.mxu0 %v1183
    %1231 = vmatprep.subr.mxu0 %v1182
    %1232 = vmatpush1.msra.mxu0 %v1181
    %1233 = vmatprep.subr.mxu0 %v1180
    %1234 = vmatpush1.msra.mxu0 %v1179
    %1235 = vmatprep.subr.mxu0 %v1178
    %1236 = vmatpush1.msra.mxu0 %v1177
    %1237 = vmatprep.subr.mxu0 %v1176
    %1238 = vmatpush1.msra.mxu0 %v1175
    %1239 = vmatprep.subr.mxu0 %v1174
    %1240 = vmatpush1.msra.mxu0 %v1173
    %1241 = vmatprep.subr.mxu0 %v1172
    %1242 = vmatpush1.msra.mxu0 %v1171
    %1243 = vmatprep.subr.mxu0 %v1170
    %1244 = vmatpush1.msra.mxu0 %v1169
    %1245 = vmatprep.subr.mxu0 %v1168
    %1246 = vmatpush1.msra.mxu0 %v1167
    %1247 = vmatprep.subr.mxu0 %v1166
    %1248 = vmatpush1.msra.mxu0 %v1165
    %1249 = vmatprep.subr.mxu0 %v1164
    %1250 = vmatpush1.msra.mxu0 %v1163
    %1251 = vmatprep.subr.mxu0 %v1162
    %1252 = vmatpush1.msra.mxu0 %v1161
    %1253 = vmatprep.subr.mxu0 %v1160
    %1254 = vmatpush1.msra.mxu0 %v1159
    %1255 = vmatprep.subr.mxu0 %v1222
    %1256 = vmatpush2.msra.mxu0 %v1221
    %1257 = vmatprep.subr.mxu0 %v1220
    %1258 = vmatpush2.msra.mxu0 %v1219
    %1259 = vmatprep.subr.mxu0 %v1218
    %1260 = vmatpush2.msra.mxu0 %v1217
    %1261 = vmatprep.subr.mxu0 %v1216
    %1262 = vmatpush2.msra.mxu0 %v1215
    %1263 = vmatprep.subr.mxu0 %v1214
    %1264 = vmatpush2.msra.mxu0 %v1213
    %1265 = vmatprep.subr.mxu0 %v1212
    %1266 = vmatpush2.msra.mxu0 %v1211
    %1267 = vmatprep.subr.mxu0 %v1210
    %1268 = vmatpush2.msra.mxu0 %v1209
    %1269 = vmatprep.subr.mxu0 %v1208
    %1270 = vmatpush2.msra.mxu0 %v1207
    %1271 = vmatprep.subr.mxu0 %v1206
    %1272 = vmatpush2.msra.mxu0 %v1205
    %1273 = vmatprep.subr.mxu0 %v1204
    %1274 = vmatpush2.msra.mxu0 %v1203
    %1275 = vmatprep.subr.mxu0 %v1202
    %1276 = vmatpush2.msra.mxu0 %v1201
    %1277 = vmatprep.subr.mxu0 %v1200
    %1278 = vmatpush2.msra.mxu0 %v1199
    %1279 = vmatprep.subr.mxu0 %v1198
    %1280 = vmatpush2.msra.mxu0 %v1197
    %1281 = vmatprep.subr.mxu0 %v1196
    %1282 = vmatpush2.msra.mxu0 %v1195
    %1283 = vmatprep.subr.mxu0 %v1194
    %1284 = vmatpush2.msra.mxu0 %v1193
    %1285 = vmatprep.subr.mxu0 %v1192
    %1286 = vmatpush2.msra.mxu0 %v1191
    %1287 = vmatprep.mubr.f32.mxu0 %v1128
    %1288 = vmatmul.mubr.f32.gmra.mxu0 %v1127
    %v1289 = vpop.f32.mrf.mxu0
    %v1290 = vadd.f32 0.0, %v1289
    %v1291 = vpop.f32.mrf.mxu0
    %v1292 = vadd.f32 0.0, %v1291
    %1293 = vmatprep.mubr.f32.mxu0 %v1130
    %1294 = vmatmul.mubr.f32.gmra.mxu0 %v1129
    %v1295 = vpop.f32.mrf.mxu0
    %v1296 = vadd.f32 0.0, %v1295
    %v1297 = vpop.f32.mrf.mxu0
    %v1298 = vadd.f32 0.0, %v1297
    %1299 = vmatprep.mubr.f32.mxu0 %v1132
    %1300 = vmatmul.mubr.f32.gmra.mxu0 %v1131
    %v1301 = vpop.f32.mrf.mxu0
    %v1302 = vadd.f32 0.0, %v1301
    %v1303 = vpop.f32.mrf.mxu0
    %v1304 = vadd.f32 0.0, %v1303
    %1305 = vmatprep.mubr.f32.mxu0 %v1134
    %1306 = vmatmul.mubr.f32.gmra.mxu0 %v1133
    %v1307 = vpop.f32.mrf.mxu0
    %v1308 = vadd.f32 0.0, %v1307
    %v1309 = vpop.f32.mrf.mxu0
    %v1310 = vadd.f32 0.0, %v1309
    %1311 = vmatprep.mubr.f32.mxu0 %v1136
    %1312 = vmatmul.mubr.f32.gmra.mxu0 %v1135
    %v1313 = vpop.f32.mrf.mxu0
    %v1314 = vadd.f32 0.0, %v1313
    %v1315 = vpop.f32.mrf.mxu0
    %v1316 = vadd.f32 0.0, %v1315
    %1317 = vmatprep.mubr.f32.mxu0 %v1138
    %1318 = vmatmul.mubr.f32.gmra.mxu0 %v1137
    %v1319 = vpop.f32.mrf.mxu0
    %v1320 = vadd.f32 0.0, %v1319
    %v1321 = vpop.f32.mrf.mxu0
    %v1322 = vadd.f32 0.0, %v1321
    %1323 = vmatprep.mubr.f32.mxu0 %v1140
    %1324 = vmatmul.mubr.f32.gmra.mxu0 %v1139
    %v1325 = vpop.f32.mrf.mxu0
    %v1326 = vadd.f32 0.0, %v1325
    %v1327 = vpop.f32.mrf.mxu0
    %v1328 = vadd.f32 0.0, %v1327
    %1329 = vmatprep.mubr.f32.mxu0 %v1142
    %1330 = vmatmul.mubr.f32.gmra.mxu0 %v1141
    %v1331 = vpop.f32.mrf.mxu0
    %v1332 = vadd.f32 0.0, %v1331
    %v1333 = vpop.f32.mrf.mxu0
    %v1334 = vadd.f32 0.0, %v1333
    %1335 = vmatprep.mubr.f32.mxu0 %v1144
    %1336 = vmatmul.mubr.f32.gmra.mxu0 %v1143
    %v1337 = vpop.f32.mrf.mxu0
    %v1338 = vadd.f32 0.0, %v1337
    %v1339 = vpop.f32.mrf.mxu0
    %v1340 = vadd.f32 0.0, %v1339
    %1341 = vmatprep.mubr.f32.mxu0 %v1146
    %1342 = vmatmul.mubr.f32.gmra.mxu0 %v1145
    %v1343 = vpop.f32.mrf.mxu0
    %v1344 = vadd.f32 0.0, %v1343
    %v1345 = vpop.f32.mrf.mxu0
    %v1346 = vadd.f32 0.0, %v1345
    %1347 = vmatprep.mubr.f32.mxu0 %v1148
    %1348 = vmatmul.mubr.f32.gmra.mxu0 %v1147
    %v1349 = vpop.f32.mrf.mxu0
    %v1350 = vadd.f32 0.0, %v1349
    %v1351 = vpop.f32.mrf.mxu0
    %v1352 = vadd.f32 0.0, %v1351
    %1353 = vmatprep.mubr.f32.mxu0 %v1150
    %1354 = vmatmul.mubr.f32.gmra.mxu0 %v1149
    %v1355 = vpop.f32.mrf.mxu0
    %v1356 = vadd.f32 0.0, %v1355
    %v1357 = vpop.f32.mrf.mxu0
    %v1358 = vadd.f32 0.0, %v1357
    %1359 = vmatprep.mubr.f32.mxu0 %v1152
    %1360 = vmatmul.mubr.f32.gmra.mxu0 %v1151
    %v1361 = vpop.f32.mrf.mxu0
    %v1362 = vadd.f32 0.0, %v1361
    %v1363 = vpop.f32.mrf.mxu0
    %v1364 = vadd.f32 0.0, %v1363
    %1365 = vmatprep.mubr.f32.mxu0 %v1154
    %1366 = vmatmul.mubr.f32.gmra.mxu0 %v1153
    %v1367 = vpop.f32.mrf.mxu0
    %v1368 = vadd.f32 0.0, %v1367
    %v1369 = vpop.f32.mrf.mxu0
    %v1370 = vadd.f32 0.0, %v1369
    %1371 = vmatprep.mubr.f32.mxu0 %v1156
    %1372 = vmatmul.mubr.f32.gmra.mxu0 %v1155
    %v1373 = vpop.f32.mrf.mxu0
    %v1374 = vadd.f32 0.0, %v1373
    %v1375 = vpop.f32.mrf.mxu0
    %v1376 = vadd.f32 0.0, %v1375
    %1377 = vmatprep.mubr.f32.mxu0 %v1158
    %1378 = vmatmul.mubr.f32.gmra.mxu0 %v1157
    %v1379 = vpop.f32.mrf.mxu0
    %v1380 = vadd.f32 0.0, %v1379
    %v1381 = vpop.f32.mrf.mxu0
    %v1382 = vadd.f32 0.0, %v1381
    %1383 = vdwg.mxu0
    %v1384 = vsel %vm471, 1.0, %v1292
    %v1385 = vsel %vm471, 1.0, %v1298
    %v1386 = vsel %vm471, 1.0, %v1304
    %v1387 = vsel %vm471, 1.0, %v1310
    %v1388 = vsel %vm471, 1.0, %v1316
    %v1389 = vsel %vm471, 1.0, %v1322
    %v1390 = vsel %vm471, 1.0, %v1328
    %v1391 = vsel %vm471, 1.0, %v1334
    %v1392 = vsel %vm471, 1.0, %v1340
    %v1393 = vsel %vm471, 1.0, %v1346
    %v1394 = vsel %vm471, 1.0, %v1352
    %v1395 = vsel %vm471, 1.0, %v1358
    %v1396 = vsel %vm471, 1.0, %v1364
    %v1397 = vsel %vm471, 1.0, %v1370
    %v1398 = vsel %vm471, 1.0, %v1376
    %v1399 = vsel %vm471, 1.0, %v1382
    %v1400 = vsel %vm488, 1.0, %v1292
    %v1401 = vsel %vm488, 1.0, %v1298
    %v1402 = vsel %vm488, 1.0, %v1304
    %v1403 = vsel %vm488, 1.0, %v1310
    %v1404 = vsel %vm488, 1.0, %v1316
    %v1405 = vsel %vm488, 1.0, %v1322
    %v1406 = vsel %vm488, 1.0, %v1328
    %v1407 = vsel %vm488, 1.0, %v1334
    %v1408 = vsel %vm488, 1.0, %v1340
    %v1409 = vsel %vm488, 1.0, %v1346
    %v1410 = vsel %vm488, 1.0, %v1352
    %v1411 = vsel %vm488, 1.0, %v1358
    %v1412 = vsel %vm488, 1.0, %v1364
    %v1413 = vsel %vm488, 1.0, %v1370
    %v1414 = vsel %vm488, 1.0, %v1376
    %v1415 = vsel %vm488, 1.0, %v1382
    %1416 = vmatprep.subr.mxu0 0.0
    %1417 = vmatpush1.xpose.msra.mxu0 %v1415
    %1418 = vmatprep.subr.mxu0 0.0
    %1419 = vmatpush1.xpose.msra.mxu0 %v1414
    %1420 = vmatprep.subr.mxu0 0.0
    %1421 = vmatpush1.xpose.msra.mxu0 %v1413
    %1422 = vmatprep.subr.mxu0 0.0
    %1423 = vmatpush1.xpose.msra.mxu0 %v1412
    %1424 = vmatprep.subr.mxu0 0.0
    %1425 = vmatpush1.xpose.msra.mxu0 %v1411
    %1426 = vmatprep.subr.mxu0 0.0
    %1427 = vmatpush1.xpose.msra.mxu0 %v1410
    %1428 = vmatprep.subr.mxu0 0.0
    %1429 = vmatpush1.xpose.msra.mxu0 %v1409
    %1430 = vmatprep.subr.mxu0 0.0
    %1431 = vmatpush1.xpose.msra.mxu0 %v1408
    %1432 = vmatprep.subr.mxu0 0.0
    %1433 = vmatpush1.xpose.msra.mxu0 %v1407
    %1434 = vmatprep.subr.mxu0 0.0
    %1435 = vmatpush1.xpose.msra.mxu0 %v1406
    %1436 = vmatprep.subr.mxu0 0.0
    %1437 = vmatpush1.xpose.msra.mxu0 %v1405
    %1438 = vmatprep.subr.mxu0 0.0
    %1439 = vmatpush1.xpose.msra.mxu0 %v1404
    %1440 = vmatprep.subr.mxu0 0.0
    %1441 = vmatpush1.xpose.msra.mxu0 %v1403
    %1442 = vmatprep.subr.mxu0 0.0
    %1443 = vmatpush1.xpose.msra.mxu0 %v1402
    %1444 = vmatprep.subr.mxu0 0.0
    %1445 = vmatpush1.xpose.msra.mxu0 %v1401
    %1446 = vmatprep.subr.mxu0 0.0
    %1447 = vmatpush1.xpose.msra.mxu0 %v1400
    %1448 = vmatprep.subr.mxu0 0.0
    %1449 = vmatpush2.xpose.msra.mxu0 0.0
    %1450 = vmatprep.subr.mxu0 0.0
    %1451 = vmatpush2.xpose.msra.mxu0 0.0
    %1452 = vmatprep.subr.mxu0 0.0
    %1453 = vmatpush2.xpose.msra.mxu0 0.0
    %1454 = vmatprep.subr.mxu0 0.0
    %1455 = vmatpush2.xpose.msra.mxu0 0.0
    %1456 = vmatprep.subr.mxu0 0.0
    %1457 = vmatpush2.xpose.msra.mxu0 0.0
    %1458 = vmatprep.subr.mxu0 0.0
    %1459 = vmatpush2.xpose.msra.mxu0 0.0
    %1460 = vmatprep.subr.mxu0 0.0
    %1461 = vmatpush2.xpose.msra.mxu0 0.0
    %1462 = vmatprep.subr.mxu0 0.0
    %1463 = vmatpush2.xpose.msra.mxu0 0.0
    %1464 = vmatprep.subr.mxu0 0.0
    %1465 = vmatpush2.xpose.msra.mxu0 0.0
    %1466 = vmatprep.subr.mxu0 0.0
    %1467 = vmatpush2.xpose.msra.mxu0 0.0
    %1468 = vmatprep.subr.mxu0 0.0
    %1469 = vmatpush2.xpose.msra.mxu0 0.0
    %1470 = vmatprep.subr.mxu0 0.0
    %1471 = vmatpush2.xpose.msra.mxu0 0.0
    %1472 = vmatprep.subr.mxu0 0.0
    %1473 = vmatpush2.xpose.msra.mxu0 0.0
    %1474 = vmatprep.subr.mxu0 0.0
    %1475 = vmatpush2.xpose.msra.mxu0 0.0
    %1476 = vmatprep.subr.mxu0 0.0
    %1477 = vmatpush2.xpose.msra.mxu0 0.0
    %1478 = vmatprep.subr.mxu0 0.0
    %1479 = vmatpush2.xpose.msra.mxu0 0.0
    %1480 = vmatprep.mubr.f32.mxu0 0.0
    %1481 = vmatmul.mubr.f32.gmra.mxu0 %v1384
    %v1482 = vpop.f32.mrf.mxu0
    %v1483 = vadd.f32 0.0, %v1482
    %v1484 = vpop.f32.mrf.mxu0
    %1485 = vmatprep.mubr.f32.mxu0 0.0
    %1486 = vmatmul.mubr.f32.gmra.mxu0 %v1385
    %v1487 = vpop.f32.mrf.mxu0
    %v1488 = vadd.f32 0.0, %v1487
    %v1489 = vpop.f32.mrf.mxu0
    %1490 = vmatprep.mubr.f32.mxu0 0.0
    %1491 = vmatmul.mubr.f32.gmra.mxu0 %v1386
    %v1492 = vpop.f32.mrf.mxu0
    %v1493 = vadd.f32 0.0, %v1492
    %v1494 = vpop.f32.mrf.mxu0
    %1495 = vmatprep.mubr.f32.mxu0 0.0
    %1496 = vmatmul.mubr.f32.gmra.mxu0 %v1387
    %v1497 = vpop.f32.mrf.mxu0
    %v1498 = vadd.f32 0.0, %v1497
    %v1499 = vpop.f32.mrf.mxu0
    %1500 = vmatprep.mubr.f32.mxu0 0.0
    %1501 = vmatmul.mubr.f32.gmra.mxu0 %v1388
    %v1502 = vpop.f32.mrf.mxu0
    %v1503 = vadd.f32 0.0, %v1502
    %v1504 = vpop.f32.mrf.mxu0
    %1505 = vmatprep.mubr.f32.mxu0 0.0
    %1506 = vmatmul.mubr.f32.gmra.mxu0 %v1389
    %v1507 = vpop.f32.mrf.mxu0
    %v1508 = vadd.f32 0.0, %v1507
    %v1509 = vpop.f32.mrf.mxu0
    %1510 = vmatprep.mubr.f32.mxu0 0.0
    %1511 = vmatmul.mubr.f32.gmra.mxu0 %v1390
    %v1512 = vpop.f32.mrf.mxu0
    %v1513 = vadd.f32 0.0, %v1512
    %v1514 = vpop.f32.mrf.mxu0
    %1515 = vmatprep.mubr.f32.mxu0 0.0
    %1516 = vmatmul.mubr.f32.gmra.mxu0 %v1391
    %v1517 = vpop.f32.mrf.mxu0
    %v1518 = vadd.f32 0.0, %v1517
    %v1519 = vpop.f32.mrf.mxu0
    %1520 = vmatprep.mubr.f32.mxu0 0.0
    %1521 = vmatmul.mubr.f32.gmra.mxu0 %v1392
    %v1522 = vpop.f32.mrf.mxu0
    %v1523 = vadd.f32 0.0, %v1522
    %v1524 = vpop.f32.mrf.mxu0
    %1525 = vmatprep.mubr.f32.mxu0 0.0
    %1526 = vmatmul.mubr.f32.gmra.mxu0 %v1393
    %v1527 = vpop.f32.mrf.mxu0
    %v1528 = vadd.f32 0.0, %v1527
    %v1529 = vpop.f32.mrf.mxu0
    %1530 = vmatprep.mubr.f32.mxu0 0.0
    %1531 = vmatmul.mubr.f32.gmra.mxu0 %v1394
    %v1532 = vpop.f32.mrf.mxu0
    %v1533 = vadd.f32 0.0, %v1532
    %v1534 = vpop.f32.mrf.mxu0
    %1535 = vmatprep.mubr.f32.mxu0 0.0
    %1536 = vmatmul.mubr.f32.gmra.mxu0 %v1395
    %v1537 = vpop.f32.mrf.mxu0
    %v1538 = vadd.f32 0.0, %v1537
    %v1539 = vpop.f32.mrf.mxu0
    %1540 = vmatprep.mubr.f32.mxu0 0.0
    %1541 = vmatmul.mubr.f32.gmra.mxu0 %v1396
    %v1542 = vpop.f32.mrf.mxu0
    %v1543 = vadd.f32 0.0, %v1542
    %v1544 = vpop.f32.mrf.mxu0
    %1545 = vmatprep.mubr.f32.mxu0 0.0
    %1546 = vmatmul.mubr.f32.gmra.mxu0 %v1397
    %v1547 = vpop.f32.mrf.mxu0
    %v1548 = vadd.f32 0.0, %v1547
    %v1549 = vpop.f32.mrf.mxu0
    %1550 = vmatprep.mubr.f32.mxu0 0.0
    %1551 = vmatmul.mubr.f32.gmra.mxu0 %v1398
    %v1552 = vpop.f32.mrf.mxu0
    %v1553 = vadd.f32 0.0, %v1552
    %v1554 = vpop.f32.mrf.mxu0
    %1555 = vmatprep.mubr.f32.mxu0 0.0
    %1556 = vmatmul.mubr.f32.gmra.mxu0 %v1399
    %v1557 = vpop.f32.mrf.mxu0
    %v1558 = vadd.f32 0.0, %v1557
    %v1559 = vpop.f32.mrf.mxu0
    %1560 = vdwg.mxu0
    %v1561 = vmul.f32 %v1483, 0.2
    %v1562 = vmul.f32 %v1488, 0.2
    %v1563 = vmul.f32 %v1493, 0.2
    %v1564 = vmul.f32 %v1498, 0.2
    %v1565 = vmul.f32 %v1503, 0.2
    %v1566 = vmul.f32 %v1508, 0.2
    %v1567 = vmul.f32 %v1513, 0.2
    %v1568 = vmul.f32 %v1518, 0.2
    %v1569 = vmul.f32 %v1523, 0.2
    %v1570 = vmul.f32 %v1528, 0.2
    %v1571 = vmul.f32 %v1533, 0.2
    %v1572 = vmul.f32 %v1538, 0.2
    %v1573 = vmul.f32 %v1543, 0.2
    %v1574 = vmul.f32 %v1548, 0.2
    %v1575 = vmul.f32 %v1553, 0.2
    %v1576 = vmul.f32 %v1558, 0.2
    %v1577 = vmax.f32 %v1483, %v1561
    %v1578 = vmax.f32 %v1488, %v1562
    %v1579 = vmax.f32 %v1493, %v1563
    %v1580 = vmax.f32 %v1498, %v1564
    %v1581 = vmax.f32 %v1503, %v1565
    %v1582 = vmax.f32 %v1508, %v1566
    %v1583 = vmax.f32 %v1513, %v1567
    %v1584 = vmax.f32 %v1518, %v1568
    %v1585 = vmax.f32 %v1523, %v1569
    %v1586 = vmax.f32 %v1528, %v1570
    %v1587 = vmax.f32 %v1533, %v1571
    %v1588 = vmax.f32 %v1538, %v1572
    %v1589 = vmax.f32 %v1543, %v1573
    %v1590 = vmax.f32 %v1548, %v1574
    %v1591 = vmax.f32 %v1553, %v1575
    %v1592 = vmax.f32 %v1558, %v1576
    %v1593 = vadd.f32 %v1577, %v70
    %v1594 = vadd.f32 %v1578, %v71
    %v1595 = vadd.f32 %v1579, %v72
    %v1596 = vadd.f32 %v1580, %v73
    %v1597 = vadd.f32 %v1581, %v74
    %v1598 = vadd.f32 %v1582, %v75
    %v1599 = vadd.f32 %v1583, %v76
    %v1600 = vadd.f32 %v1584, %v77
    %v1601 = vadd.f32 %v1585, %v78
    %v1602 = vadd.f32 %v1586, %v79
    %v1603 = vadd.f32 %v1587, %v80
    %v1604 = vadd.f32 %v1588, %v81
    %v1605 = vadd.f32 %v1589, %v82
    %v1606 = vadd.f32 %v1590, %v83
    %v1607 = vadd.f32 %v1591, %v84
    %v1608 = vadd.f32 %v1592, %v85
    %1609 = vmax.xlane.f32.xlu0 %v1593
    %v1610 = vpop.xlane.xlu0 %1609
    %1611 = vmax.xlane.f32.xlu0 %v1594
    %v1612 = vpop.xlane.xlu0 %1611
    %1613 = vmax.xlane.f32.xlu0 %v1595
    %v1614 = vpop.xlane.xlu0 %1613
    %1615 = vmax.xlane.f32.xlu0 %v1596
    %v1616 = vpop.xlane.xlu0 %1615
    %1617 = vmax.xlane.f32.xlu0 %v1597
    %v1618 = vpop.xlane.xlu0 %1617
    %1619 = vmax.xlane.f32.xlu0 %v1598
    %v1620 = vpop.xlane.xlu0 %1619
    %1621 = vmax.xlane.f32.xlu0 %v1599
    %v1622 = vpop.xlane.xlu0 %1621
    %1623 = vmax.xlane.f32.xlu0 %v1600
    %v1624 = vpop.xlane.xlu0 %1623
    %1625 = vmax.xlane.f32.xlu0 %v1601
    %v1626 = vpop.xlane.xlu0 %1625
    %1627 = vmax.xlane.f32.xlu0 %v1602
    %v1628 = vpop.xlane.xlu0 %1627
    %1629 = vmax.xlane.f32.xlu0 %v1603
    %v1630 = vpop.xlane.xlu0 %1629
    %1631 = vmax.xlane.f32.xlu0 %v1604
    %v1632 = vpop.xlane.xlu0 %1631
    %1633 = vmax.xlane.f32.xlu0 %v1605
    %v1634 = vpop.xlane.xlu0 %1633
    %1635 = vmax.xlane.f32.xlu0 %v1606
    %v1636 = vpop.xlane.xlu0 %1635
    %1637 = vmax.xlane.f32.xlu0 %v1607
    %v1638 = vpop.xlane.xlu0 %1637
    %1639 = vmax.xlane.f32.xlu0 %v1608
    %v1640 = vpop.xlane.xlu0 %1639
    %v1641 = vsub.f32 %v1593, %v1610
    %v1642 = vsub.f32 %v1594, %v1612
    %v1643 = vsub.f32 %v1595, %v1614
    %v1644 = vsub.f32 %v1596, %v1616
    %v1645 = vsub.f32 %v1597, %v1618
    %v1646 = vsub.f32 %v1598, %v1620
    %v1647 = vsub.f32 %v1599, %v1622
    %v1648 = vsub.f32 %v1600, %v1624
    %v1649 = vsub.f32 %v1601, %v1626
    %v1650 = vsub.f32 %v1602, %v1628
    %v1651 = vsub.f32 %v1603, %v1630
    %v1652 = vsub.f32 %v1604, %v1632
    %v1653 = vsub.f32 %v1605, %v1634
    %v1654 = vsub.f32 %v1606, %v1636
    %v1655 = vsub.f32 %v1607, %v1638
    %v1656 = vsub.f32 %v1608, %v1640
    %v1657 = vmul.f32 %v1641, 1.442695
    %v1658 = vpow.pop %v1657
    %v1659 = vmul.f32 %v1642, 1.442695
    %v1660 = vpow.pop %v1659
    %v1661 = vmul.f32 %v1643, 1.442695
    %v1662 = vpow.pop %v1661
    %v1663 = vmul.f32 %v1644, 1.442695
    %v1664 = vpow.pop %v1663
    %v1665 = vmul.f32 %v1645, 1.442695
    %v1666 = vpow.pop %v1665
    %v1667 = vmul.f32 %v1646, 1.442695
    %v1668 = vpow.pop %v1667
    %v1669 = vmul.f32 %v1647, 1.442695
    %v1670 = vpow.pop %v1669
    %v1671 = vmul.f32 %v1648, 1.442695
    %v1672 = vpow.pop %v1671
    %v1673 = vmul.f32 %v1649, 1.442695
    %v1674 = vpow.pop %v1673
    %v1675 = vmul.f32 %v1650, 1.442695
    %v1676 = vpow.pop %v1675
    %v1677 = vmul.f32 %v1651, 1.442695
    %v1678 = vpow.pop %v1677
    %v1679 = vmul.f32 %v1652, 1.442695
    %v1680 = vpow.pop %v1679
    %v1681 = vmul.f32 %v1653, 1.442695
    %v1682 = vpow.pop %v1681
    %v1683 = vmul.f32 %v1654, 1.442695
    %v1684 = vpow.pop %v1683
    %v1685 = vmul.f32 %v1655, 1.442695
    %v1686 = vpow.pop %v1685
    %v1687 = vmul.f32 %v1656, 1.442695
    %v1688 = vpow.pop %v1687
    %1689 = vadd.xlane.f32.xlu0 %v1658
    %v1690 = vpop.xlane.xlu0 %1689
    %1691 = vadd.xlane.f32.xlu0 %v1660
    %v1692 = vpop.xlane.xlu0 %1691
    %1693 = vadd.xlane.f32.xlu0 %v1662
    %v1694 = vpop.xlane.xlu0 %1693
    %1695 = vadd.xlane.f32.xlu0 %v1664
    %v1696 = vpop.xlane.xlu0 %1695
    %1697 = vadd.xlane.f32.xlu0 %v1666
    %v1698 = vpop.xlane.xlu0 %1697
    %1699 = vadd.xlane.f32.xlu0 %v1668
    %v1700 = vpop.xlane.xlu0 %1699
    %1701 = vadd.xlane.f32.xlu0 %v1670
    %v1702 = vpop.xlane.xlu0 %1701
    %1703 = vadd.xlane.f32.xlu0 %v1672
    %v1704 = vpop.xlane.xlu0 %1703
    %1705 = vadd.xlane.f32.xlu0 %v1674
    %v1706 = vpop.xlane.xlu0 %1705
    %1707 = vadd.xlane.f32.xlu0 %v1676
    %v1708 = vpop.xlane.xlu0 %1707
    %1709 = vadd.xlane.f32.xlu0 %v1678
    %v1710 = vpop.xlane.xlu0 %1709
    %1711 = vadd.xlane.f32.xlu0 %v1680
    %v1712 = vpop.xlane.xlu0 %1711
    %1713 = vadd.xlane.f32.xlu0 %v1682
    %v1714 = vpop.xlane.xlu0 %1713
    %1715 = vadd.xlane.f32.xlu0 %v1684
    %v1716 = vpop.xlane.xlu0 %1715
    %1717 = vadd.xlane.f32.xlu0 %v1686
    %v1718 = vpop.xlane.xlu0 %1717
    %1719 = vadd.xlane.f32.xlu0 %v1688
    %v1720 = vpop.xlane.xlu0 %1719
    %v1721 = vmax.f32 %v1690, 1e-30
    %v1722 = vmax.f32 %v1692, 1e-30
    %v1723 = vmax.f32 %v1694, 1e-30
    %v1724 = vmax.f32 %v1696, 1e-30
    %v1725 = vmax.f32 %v1698, 1e-30
    %v1726 = vmax.f32 %v1700, 1e-30
    %v1727 = vmax.f32 %v1702, 1e-30
    %v1728 = vmax.f32 %v1704, 1e-30
    %v1729 = vmax.f32 %v1706, 1e-30
    %v1730 = vmax.f32 %v1708, 1e-30
    %v1731 = vmax.f32 %v1710, 1e-30
    %v1732 = vmax.f32 %v1712, 1e-30
    %v1733 = vmax.f32 %v1714, 1e-30
    %v1734 = vmax.f32 %v1716, 1e-30
    %v1735 = vmax.f32 %v1718, 1e-30
    %v1736 = vmax.f32 %v1720, 1e-30
    %1737 = vmatprep.subr.mxu0 0.0
    %1738 = vmatpush1.msra.mxu0 %v1380
    %1739 = vmatprep.subr.mxu0 0.0
    %1740 = vmatpush1.msra.mxu0 %v1374
    %1741 = vmatprep.subr.mxu0 0.0
    %1742 = vmatpush1.msra.mxu0 %v1368
    %1743 = vmatprep.subr.mxu0 0.0
    %1744 = vmatpush1.msra.mxu0 %v1362
    %1745 = vmatprep.subr.mxu0 0.0
    %1746 = vmatpush1.msra.mxu0 %v1356
    %1747 = vmatprep.subr.mxu0 0.0
    %1748 = vmatpush1.msra.mxu0 %v1350
    %1749 = vmatprep.subr.mxu0 0.0
    %1750 = vmatpush1.msra.mxu0 %v1344
    %1751 = vmatprep.subr.mxu0 0.0
    %1752 = vmatpush1.msra.mxu0 %v1338
    %1753 = vmatprep.subr.mxu0 0.0
    %1754 = vmatpush1.msra.mxu0 %v1332
    %1755 = vmatprep.subr.mxu0 0.0
    %1756 = vmatpush1.msra.mxu0 %v1326
    %1757 = vmatprep.subr.mxu0 0.0
    %1758 = vmatpush1.msra.mxu0 %v1320
    %1759 = vmatprep.subr.mxu0 0.0
    %1760 = vmatpush1.msra.mxu0 %v1314
    %1761 = vmatprep.subr.mxu0 0.0
    %1762 = vmatpush1.msra.mxu0 %v1308
    %1763 = vmatprep.subr.mxu0 0.0
    %1764 = vmatpush1.msra.mxu0 %v1302
    %1765 = vmatprep.subr.mxu0 0.0
    %1766 = vmatpush1.msra.mxu0 %v1296
    %1767 = vmatprep.subr.mxu0 0.0
    %1768 = vmatpush1.msra.mxu0 %v1290
    %1769 = vmatprep.subr.mxu0 0.0
    %1770 = vmatpush2.msra.mxu0 0.0
    %1771 = vmatprep.subr.mxu0 0.0
    %1772 = vmatpush2.msra.mxu0 0.0
    %1773 = vmatprep.subr.mxu0 0.0
    %1774 = vmatpush2.msra.mxu0 0.0
    %1775 = vmatprep.subr.mxu0 0.0
    %1776 = vmatpush2.msra.mxu0 0.0
    %1777 = vmatprep.subr.mxu0 0.0
    %1778 = vmatpush2.msra.mxu0 0.0
    %1779 = vmatprep.subr.mxu0 0.0
    %1780 = vmatpush2.msra.mxu0 0.0
    %1781 = vmatprep.subr.mxu0 0.0
    %1782 = vmatpush2.msra.mxu0 0.0
    %1783 = vmatprep.subr.mxu0 0.0
    %1784 = vmatpush2.msra.mxu0 0.0
    %1785 = vmatprep.subr.mxu0 0.0
    %1786 = vmatpush2.msra.mxu0 0.0
    %1787 = vmatprep.subr.mxu0 0.0
    %1788 = vmatpush2.msra.mxu0 0.0
    %1789 = vmatprep.subr.mxu0 0.0
    %1790 = vmatpush2.msra.mxu0 0.0
    %1791 = vmatprep.subr.mxu0 0.0
    %1792 = vmatpush2.msra.mxu0 0.0
    %1793 = vmatprep.subr.mxu0 0.0
    %1794 = vmatpush2.msra.mxu0 0.0
    %1795 = vmatprep.subr.mxu0 0.0
    %1796 = vmatpush2.msra.mxu0 0.0
    %1797 = vmatprep.subr.mxu0 0.0
    %1798 = vmatpush2.msra.mxu0 0.0
    %1799 = vmatprep.subr.mxu0 0.0
    %1800 = vmatpush2.msra.mxu0 0.0
    %1801 = vmatprep.mubr.f32.mxu0 0.0
    %1802 = vmatmul.mubr.f32.gmra.mxu0 %v1658
    %v1803 = vpop.f32.mrf.mxu0
    %v1804 = vadd.f32 0.0, %v1803
    %v1805 = vpop.f32.mrf.mxu0
    %1806 = vmatprep.mubr.f32.mxu0 0.0
    %1807 = vmatmul.mubr.f32.gmra.mxu0 %v1660
    %v1808 = vpop.f32.mrf.mxu0
    %v1809 = vadd.f32 0.0, %v1808
    %v1810 = vpop.f32.mrf.mxu0
    %1811 = vmatprep.mubr.f32.mxu0 0.0
    %1812 = vmatmul.mubr.f32.gmra.mxu0 %v1662
    %v1813 = vpop.f32.mrf.mxu0
    %v1814 = vadd.f32 0.0, %v1813
    %v1815 = vpop.f32.mrf.mxu0
    %1816 = vmatprep.mubr.f32.mxu0 0.0
    %1817 = vmatmul.mubr.f32.gmra.mxu0 %v1664
    %v1818 = vpop.f32.mrf.mxu0
    %v1819 = vadd.f32 0.0, %v1818
    %v1820 = vpop.f32.mrf.mxu0
    %1821 = vmatprep.mubr.f32.mxu0 0.0
    %1822 = vmatmul.mubr.f32.gmra.mxu0 %v1666
    %v1823 = vpop.f32.mrf.mxu0
    %v1824 = vadd.f32 0.0, %v1823
    %v1825 = vpop.f32.mrf.mxu0
    %1826 = vmatprep.mubr.f32.mxu0 0.0
    %1827 = vmatmul.mubr.f32.gmra.mxu0 %v1668
    %v1828 = vpop.f32.mrf.mxu0
    %v1829 = vadd.f32 0.0, %v1828
    %v1830 = vpop.f32.mrf.mxu0
    %1831 = vmatprep.mubr.f32.mxu0 0.0
    %1832 = vmatmul.mubr.f32.gmra.mxu0 %v1670
    %v1833 = vpop.f32.mrf.mxu0
    %v1834 = vadd.f32 0.0, %v1833
    %v1835 = vpop.f32.mrf.mxu0
    %1836 = vmatprep.mubr.f32.mxu0 0.0
    %1837 = vmatmul.mubr.f32.gmra.mxu0 %v1672
    %v1838 = vpop.f32.mrf.mxu0
    %v1839 = vadd.f32 0.0, %v1838
    %v1840 = vpop.f32.mrf.mxu0
    %1841 = vmatprep.mubr.f32.mxu0 0.0
    %1842 = vmatmul.mubr.f32.gmra.mxu0 %v1674
    %v1843 = vpop.f32.mrf.mxu0
    %v1844 = vadd.f32 0.0, %v1843
    %v1845 = vpop.f32.mrf.mxu0
    %1846 = vmatprep.mubr.f32.mxu0 0.0
    %1847 = vmatmul.mubr.f32.gmra.mxu0 %v1676
    %v1848 = vpop.f32.mrf.mxu0
    %v1849 = vadd.f32 0.0, %v1848
    %v1850 = vpop.f32.mrf.mxu0
    %1851 = vmatprep.mubr.f32.mxu0 0.0
    %1852 = vmatmul.mubr.f32.gmra.mxu0 %v1678
    %v1853 = vpop.f32.mrf.mxu0
    %v1854 = vadd.f32 0.0, %v1853
    %v1855 = vpop.f32.mrf.mxu0
    %1856 = vmatprep.mubr.f32.mxu0 0.0
    %1857 = vmatmul.mubr.f32.gmra.mxu0 %v1680
    %v1858 = vpop.f32.mrf.mxu0
    %v1859 = vadd.f32 0.0, %v1858
    %v1860 = vpop.f32.mrf.mxu0
    %1861 = vmatprep.mubr.f32.mxu0 0.0
    %1862 = vmatmul.mubr.f32.gmra.mxu0 %v1682
    %v1863 = vpop.f32.mrf.mxu0
    %v1864 = vadd.f32 0.0, %v1863
    %v1865 = vpop.f32.mrf.mxu0
    %1866 = vmatprep.mubr.f32.mxu0 0.0
    %1867 = vmatmul.mubr.f32.gmra.mxu0 %v1684
    %v1868 = vpop.f32.mrf.mxu0
    %v1869 = vadd.f32 0.0, %v1868
    %v1870 = vpop.f32.mrf.mxu0
    %1871 = vmatprep.mubr.f32.mxu0 0.0
    %1872 = vmatmul.mubr.f32.gmra.mxu0 %v1686
    %v1873 = vpop.f32.mrf.mxu0
    %v1874 = vadd.f32 0.0, %v1873
    %v1875 = vpop.f32.mrf.mxu0
    %1876 = vmatprep.mubr.f32.mxu0 0.0
    %1877 = vmatmul.mubr.f32.gmra.mxu0 %v1688
    %v1878 = vpop.f32.mrf.mxu0
    %v1879 = vadd.f32 0.0, %v1878
    %v1880 = vpop.f32.mrf.mxu0
    %1881 = vdwg.mxu0
    %v1882 = vrcp.pop %v1721
    %v1883 = vmul.f32 1.0, %v1882
    %v1884 = vrcp.pop %v1722
    %v1885 = vmul.f32 1.0, %v1884
    %v1886 = vrcp.pop %v1723
    %v1887 = vmul.f32 1.0, %v1886
    %v1888 = vrcp.pop %v1724
    %v1889 = vmul.f32 1.0, %v1888
    %v1890 = vrcp.pop %v1725
    %v1891 = vmul.f32 1.0, %v1890
    %v1892 = vrcp.pop %v1726
    %v1893 = vmul.f32 1.0, %v1892
    %v1894 = vrcp.pop %v1727
    %v1895 = vmul.f32 1.0, %v1894
    %v1896 = vrcp.pop %v1728
    %v1897 = vmul.f32 1.0, %v1896
    %v1898 = vrcp.pop %v1729
    %v1899 = vmul.f32 1.0, %v1898
    %v1900 = vrcp.pop %v1730
    %v1901 = vmul.f32 1.0, %v1900
    %v1902 = vrcp.pop %v1731
    %v1903 = vmul.f32 1.0, %v1902
    %v1904 = vrcp.pop %v1732
    %v1905 = vmul.f32 1.0, %v1904
    %v1906 = vrcp.pop %v1733
    %v1907 = vmul.f32 1.0, %v1906
    %v1908 = vrcp.pop %v1734
    %v1909 = vmul.f32 1.0, %v1908
    %v1910 = vrcp.pop %v1735
    %v1911 = vmul.f32 1.0, %v1910
    %v1912 = vrcp.pop %v1736
    %v1913 = vmul.f32 1.0, %v1912
    %v1914 = vmul.f32 %v1804, %v1883
    %v1915 = vmul.f32 %v1809, %v1885
    %v1916 = vmul.f32 %v1814, %v1887
    %v1917 = vmul.f32 %v1819, %v1889
    %v1918 = vmul.f32 %v1824, %v1891
    %v1919 = vmul.f32 %v1829, %v1893
    %v1920 = vmul.f32 %v1834, %v1895
    %v1921 = vmul.f32 %v1839, %v1897
    %v1922 = vmul.f32 %v1844, %v1899
    %v1923 = vmul.f32 %v1849, %v1901
    %v1924 = vmul.f32 %v1854, %v1903
    %v1925 = vmul.f32 %v1859, %v1905
    %v1926 = vmul.f32 %v1864, %v1907
    %v1927 = vmul.f32 %v1869, %v1909
    %v1928 = vmul.f32 %v1874, %v1911
    %v1929 = vmul.f32 %v1879, %v1913
    %v1930 = vld [vmem:[%s5] sm:$0x1]
    %v1932 = vlaneseq
    %v1933 = vshrl.u32 %v1932, 7
    %v1934 = vsub.s32 0, %v1933
    %v1935 = vrot.slane %v1930, %v1934
    %v1937 = vadd.f32 %v1914, %v1935
    %v1938 = vadd.f32 %v1915, %v1935
    %v1939 = vadd.f32 %v1916, %v1935
    %v1940 = vadd.f32 %v1917, %v1935
    %v1941 = vadd.f32 %v1918, %v1935
    %v1942 = vadd.f32 %v1919, %v1935
    %v1943 = vadd.f32 %v1920, %v1935
    %v1944 = vadd.f32 %v1921, %v1935
    %v1945 = vadd.f32 %v1922, %v1935
    %v1946 = vadd.f32 %v1923, %v1935
    %v1947 = vadd.f32 %v1924, %v1935
    %v1948 = vadd.f32 %v1925, %v1935
    %v1949 = vadd.f32 %v1926, %v1935
    %v1950 = vadd.f32 %v1927, %v1935
    %v1951 = vadd.f32 %v1928, %v1935
    %v1952 = vadd.f32 %v1929, %v1935
    %v1953 = vmul.f32 %v1937, 0.01
    %v1954 = vmul.f32 %v1938, 0.01
    %v1955 = vmul.f32 %v1939, 0.01
    %v1956 = vmul.f32 %v1940, 0.01
    %v1957 = vmul.f32 %v1941, 0.01
    %v1958 = vmul.f32 %v1942, 0.01
    %v1959 = vmul.f32 %v1943, 0.01
    %v1960 = vmul.f32 %v1944, 0.01
    %v1961 = vmul.f32 %v1945, 0.01
    %v1962 = vmul.f32 %v1946, 0.01
    %v1963 = vmul.f32 %v1947, 0.01
    %v1964 = vmul.f32 %v1948, 0.01
    %v1965 = vmul.f32 %v1949, 0.01
    %v1966 = vmul.f32 %v1950, 0.01
    %v1967 = vmul.f32 %v1951, 0.01
    %v1968 = vmul.f32 %v1952, 0.01
    %v1969 = vmax.f32 %v1937, %v1953
    %v1970 = vmax.f32 %v1938, %v1954
    %v1971 = vmax.f32 %v1939, %v1955
    %v1972 = vmax.f32 %v1940, %v1956
    %v1973 = vmax.f32 %v1941, %v1957
    %v1974 = vmax.f32 %v1942, %v1958
    %v1975 = vmax.f32 %v1943, %v1959
    %v1976 = vmax.f32 %v1944, %v1960
    %v1977 = vmax.f32 %v1945, %v1961
    %v1978 = vmax.f32 %v1946, %v1962
    %v1979 = vmax.f32 %v1947, %v1963
    %v1980 = vmax.f32 %v1948, %v1964
    %v1981 = vmax.f32 %v1949, %v1965
    %v1982 = vmax.f32 %v1950, %v1966
    %v1983 = vmax.f32 %v1951, %v1967
    %v1984 = vmax.f32 %v1952, %v1968
    %v1985 = vld [vmem:[#allocation6] sm:$0xff]
    %v1986 = vld [vmem:[#allocation6 + $0x8] sm:$0xff]
    %v1987 = vld [vmem:[#allocation6 + $0x10] sm:$0xff]
    %v1988 = vld [vmem:[#allocation6 + $0x18] sm:$0xff]
    %v1989 = vld [vmem:[#allocation6 + $0x20] sm:$0xff]
    %v1990 = vld [vmem:[#allocation6 + $0x28] sm:$0xff]
    %v1991 = vld [vmem:[#allocation6 + $0x30] sm:$0xff]
    %v1992 = vld [vmem:[#allocation6 + $0x38] sm:$0xff]
    %v1993 = vld [vmem:[#allocation6 + $0x40] sm:$0xff]
    %v1994 = vld [vmem:[#allocation6 + $0x48] sm:$0xff]
    %v1995 = vld [vmem:[#allocation6 + $0x50] sm:$0xff]
    %v1996 = vld [vmem:[#allocation6 + $0x58] sm:$0xff]
    %v1997 = vld [vmem:[#allocation6 + $0x60] sm:$0xff]
    %v1998 = vld [vmem:[#allocation6 + $0x68] sm:$0xff]
    %v1999 = vld [vmem:[#allocation6 + $0x70] sm:$0xff]
    %v2000 = vld [vmem:[#allocation6 + $0x78] sm:$0xff]
    %v2001 = vld [vmem:[#allocation6 + $0x80] sm:$0xff]
    %v2002 = vld [vmem:[#allocation6 + $0x88] sm:$0xff]
    %v2003 = vld [vmem:[#allocation6 + $0x90] sm:$0xff]
    %v2004 = vld [vmem:[#allocation6 + $0x98] sm:$0xff]
    %v2005 = vld [vmem:[#allocation6 + $0xa0] sm:$0xff]
    %v2006 = vld [vmem:[#allocation6 + $0xa8] sm:$0xff]
    %v2007 = vld [vmem:[#allocation6 + $0xb0] sm:$0xff]
    %v2008 = vld [vmem:[#allocation6 + $0xb8] sm:$0xff]
    %v2009 = vld [vmem:[#allocation6 + $0xc0] sm:$0xff]
    %v2010 = vld [vmem:[#allocation6 + $0xc8] sm:$0xff]
    %v2011 = vld [vmem:[#allocation6 + $0xd0] sm:$0xff]
    %v2012 = vld [vmem:[#allocation6 + $0xd8] sm:$0xff]
    %v2013 = vld [vmem:[#allocation6 + $0xe0] sm:$0xff]
    %v2014 = vld [vmem:[#allocation6 + $0xe8] sm:$0xff]
    %v2015 = vld [vmem:[#allocation6 + $0xf0] sm:$0xff]
    %v2016 = vld [vmem:[#allocation6 + $0xf8] sm:$0xff]
    %2017 = vmatprep.subr.mxu0 %v2016
    %2018 = vmatpush1.msra.mxu0 %v2015
    %2019 = vmatprep.subr.mxu0 %v2014
    %2020 = vmatpush1.msra.mxu0 %v2013
    %2021 = vmatprep.subr.mxu0 %v2012
    %2022 = vmatpush1.msra.mxu0 %v2011
    %2023 = vmatprep.subr.mxu0 %v2010
    %2024 = vmatpush1.msra.mxu0 %v2009
    %2025 = vmatprep.subr.mxu0 %v2008
    %2026 = vmatpush1.msra.mxu0 %v2007
    %2027 = vmatprep.subr.mxu0 %v2006
    %2028 = vmatpush1.msra.mxu0 %v2005
    %2029 = vmatprep.subr.mxu0 %v2004
    %2030 = vmatpush1.msra.mxu0 %v2003
    %2031 = vmatprep.subr.mxu0 %v2002
    %2032 = vmatpush1.msra.mxu0 %v2001
    %2033 = vmatprep.subr.mxu0 %v2000
    %2034 = vmatpush1.msra.mxu0 %v1999
    %2035 = vmatprep.subr.mxu0 %v1998
    %2036 = vmatpush1.msra.mxu0 %v1997
    %2037 = vmatprep.subr.mxu0 %v1996
    %2038 = vmatpush1.msra.mxu0 %v1995
    %2039 = vmatprep.subr.mxu0 %v1994
    %2040 = vmatpush1.msra.mxu0 %v1993
    %2041 = vmatprep.subr.mxu0 %v1992
    %2042 = vmatpush1.msra.mxu0 %v1991
    %2043 = vmatprep.subr.mxu0 %v1990
    %2044 = vmatpush1.msra.mxu0 %v1989
    %2045 = vmatprep.subr.mxu0 %v1988
    %2046 = vmatpush1.msra.mxu0 %v1987
    %2047 = vmatprep.subr.mxu0 %v1986
    %2048 = vmatpush1.msra.mxu0 %v1985
    %2049 = vmatprep.subr.mxu0 0.0
    %2050 = vmatpush2.msra.mxu0 0.0
    %2051 = vmatprep.subr.mxu0 0.0
    %2052 = vmatpush2.msra.mxu0 0.0
    %2053 = vmatprep.subr.mxu0 0.0
    %2054 = vmatpush2.msra.mxu0 0.0
    %2055 = vmatprep.subr.mxu0 0.0
    %2056 = vmatpush2.msra.mxu0 0.0
    %2057 = vmatprep.subr.mxu0 0.0
    %2058 = vmatpush2.msra.mxu0 0.0
    %2059 = vmatprep.subr.mxu0 0.0
    %2060 = vmatpush2.msra.mxu0 0.0
    %2061 = vmatprep.subr.mxu0 0.0
    %2062 = vmatpush2.msra.mxu0 0.0
    %2063 = vmatprep.subr.mxu0 0.0
    %2064 = vmatpush2.msra.mxu0 0.0
    %2065 = vmatprep.subr.mxu0 0.0
    %2066 = vmatpush2.msra.mxu0 0.0
    %2067 = vmatprep.subr.mxu0 0.0
    %2068 = vmatpush2.msra.mxu0 0.0
    %2069 = vmatprep.subr.mxu0 0.0
    %2070 = vmatpush2.msra.mxu0 0.0
    %2071 = vmatprep.subr.mxu0 0.0
    %2072 = vmatpush2.msra.mxu0 0.0
    %2073 = vmatprep.subr.mxu0 0.0
    %2074 = vmatpush2.msra.mxu0 0.0
    %2075 = vmatprep.subr.mxu0 0.0
    %2076 = vmatpush2.msra.mxu0 0.0
    %2077 = vmatprep.subr.mxu0 0.0
    %2078 = vmatpush2.msra.mxu0 0.0
    %2079 = vmatprep.subr.mxu0 0.0
    %2080 = vmatpush2.msra.mxu0 0.0
    %2081 = vmatprep.mubr.f32.mxu0 0.0
    %2082 = vmatmul.mubr.f32.gmra.mxu0 %v1969
    %v2083 = vpop.f32.mrf.mxu0
    %v2084 = vadd.f32 0.0, %v2083
    %v2085 = vpop.f32.mrf.mxu0
    %v2086 = vadd.f32 0.0, %v2085
    %2087 = vmatprep.mubr.f32.mxu0 0.0
    %2088 = vmatmul.mubr.f32.gmra.mxu0 %v1970
    %v2089 = vpop.f32.mrf.mxu0
    %v2090 = vadd.f32 0.0, %v2089
    %v2091 = vpop.f32.mrf.mxu0
    %v2092 = vadd.f32 0.0, %v2091
    %2093 = vmatprep.mubr.f32.mxu0 0.0
    %2094 = vmatmul.mubr.f32.gmra.mxu0 %v1971
    %v2095 = vpop.f32.mrf.mxu0
    %v2096 = vadd.f32 0.0, %v2095
    %v2097 = vpop.f32.mrf.mxu0
    %v2098 = vadd.f32 0.0, %v2097
    %2099 = vmatprep.mubr.f32.mxu0 0.0
    %2100 = vmatmul.mubr.f32.gmra.mxu0 %v1972
    %v2101 = vpop.f32.mrf.mxu0
    %v2102 = vadd.f32 0.0, %v2101
    %v2103 = vpop.f32.mrf.mxu0
    %v2104 = vadd.f32 0.0, %v2103
    %2105 = vmatprep.mubr.f32.mxu0 0.0
    %2106 = vmatmul.mubr.f32.gmra.mxu0 %v1973
    %v2107 = vpop.f32.mrf.mxu0
    %v2108 = vadd.f32 0.0, %v2107
    %v2109 = vpop.f32.mrf.mxu0
    %v2110 = vadd.f32 0.0, %v2109
    %2111 = vmatprep.mubr.f32.mxu0 0.0
    %2112 = vmatmul.mubr.f32.gmra.mxu0 %v1974
    %v2113 = vpop.f32.mrf.mxu0
    %v2114 = vadd.f32 0.0, %v2113
    %v2115 = vpop.f32.mrf.mxu0
    %v2116 = vadd.f32 0.0, %v2115
    %2117 = vmatprep.mubr.f32.mxu0 0.0
    %2118 = vmatmul.mubr.f32.gmra.mxu0 %v1975
    %v2119 = vpop.f32.mrf.mxu0
    %v2120 = vadd.f32 0.0, %v2119
    %v2121 = vpop.f32.mrf.mxu0
    %v2122 = vadd.f32 0.0, %v2121
    %2123 = vmatprep.mubr.f32.mxu0 0.0
    %2124 = vmatmul.mubr.f32.gmra.mxu0 %v1976
    %v2125 = vpop.f32.mrf.mxu0
    %v2126 = vadd.f32 0.0, %v2125
    %v2127 = vpop.f32.mrf.mxu0
    %v2128 = vadd.f32 0.0, %v2127
    %2129 = vmatprep.mubr.f32.mxu0 0.0
    %2130 = vmatmul.mubr.f32.gmra.mxu0 %v1977
    %v2131 = vpop.f32.mrf.mxu0
    %v2132 = vadd.f32 0.0, %v2131
    %v2133 = vpop.f32.mrf.mxu0
    %v2134 = vadd.f32 0.0, %v2133
    %2135 = vmatprep.mubr.f32.mxu0 0.0
    %2136 = vmatmul.mubr.f32.gmra.mxu0 %v1978
    %v2137 = vpop.f32.mrf.mxu0
    %v2138 = vadd.f32 0.0, %v2137
    %v2139 = vpop.f32.mrf.mxu0
    %v2140 = vadd.f32 0.0, %v2139
    %2141 = vmatprep.mubr.f32.mxu0 0.0
    %2142 = vmatmul.mubr.f32.gmra.mxu0 %v1979
    %v2143 = vpop.f32.mrf.mxu0
    %v2144 = vadd.f32 0.0, %v2143
    %v2145 = vpop.f32.mrf.mxu0
    %v2146 = vadd.f32 0.0, %v2145
    %2147 = vmatprep.mubr.f32.mxu0 0.0
    %2148 = vmatmul.mubr.f32.gmra.mxu0 %v1980
    %v2149 = vpop.f32.mrf.mxu0
    %v2150 = vadd.f32 0.0, %v2149
    %v2151 = vpop.f32.mrf.mxu0
    %v2152 = vadd.f32 0.0, %v2151
    %2153 = vmatprep.mubr.f32.mxu0 0.0
    %2154 = vmatmul.mubr.f32.gmra.mxu0 %v1981
    %v2155 = vpop.f32.mrf.mxu0
    %v2156 = vadd.f32 0.0, %v2155
    %v2157 = vpop.f32.mrf.mxu0
    %v2158 = vadd.f32 0.0, %v2157
    %2159 = vmatprep.mubr.f32.mxu0 0.0
    %2160 = vmatmul.mubr.f32.gmra.mxu0 %v1982
    %v2161 = vpop.f32.mrf.mxu0
    %v2162 = vadd.f32 0.0, %v2161
    %v2163 = vpop.f32.mrf.mxu0
    %v2164 = vadd.f32 0.0, %v2163
    %2165 = vmatprep.mubr.f32.mxu0 0.0
    %2166 = vmatmul.mubr.f32.gmra.mxu0 %v1983
    %v2167 = vpop.f32.mrf.mxu0
    %v2168 = vadd.f32 0.0, %v2167
    %v2169 = vpop.f32.mrf.mxu0
    %v2170 = vadd.f32 0.0, %v2169
    %2171 = vmatprep.mubr.f32.mxu0 0.0
    %2172 = vmatmul.mubr.f32.gmra.mxu0 %v1984
    %v2173 = vpop.f32.mrf.mxu0
    %v2174 = vadd.f32 0.0, %v2173
    %v2175 = vpop.f32.mrf.mxu0
    %v2176 = vadd.f32 0.0, %v2175
    %2177 = vdwg.mxu0
    %v2178 = vsel %vm471, 1.0, %v2086
    %v2179 = vsel %vm471, 1.0, %v2092
    %v2180 = vsel %vm471, 1.0, %v2098
    %v2181 = vsel %vm471, 1.0, %v2104
    %v2182 = vsel %vm471, 1.0, %v2110
    %v2183 = vsel %vm471, 1.0, %v2116
    %v2184 = vsel %vm471, 1.0, %v2122
    %v2185 = vsel %vm471, 1.0, %v2128
    %v2186 = vsel %vm471, 1.0, %v2134
    %v2187 = vsel %vm471, 1.0, %v2140
    %v2188 = vsel %vm471, 1.0, %v2146
    %v2189 = vsel %vm471, 1.0, %v2152
    %v2190 = vsel %vm471, 1.0, %v2158
    %v2191 = vsel %vm471, 1.0, %v2164
    %v2192 = vsel %vm471, 1.0, %v2170
    %v2193 = vsel %vm471, 1.0, %v2176
    %v2194 = vsel %vm488, 1.0, %v2086
    %v2195 = vsel %vm488, 1.0, %v2092
    %v2196 = vsel %vm488, 1.0, %v2098
    %v2197 = vsel %vm488, 1.0, %v2104
    %v2198 = vsel %vm488, 1.0, %v2110
    %v2199 = vsel %vm488, 1.0, %v2116
    %v2200 = vsel %vm488, 1.0, %v2122
    %v2201 = vsel %vm488, 1.0, %v2128
    %v2202 = vsel %vm488, 1.0, %v2134
    %v2203 = vsel %vm488, 1.0, %v2140
    %v2204 = vsel %vm488, 1.0, %v2146
    %v2205 = vsel %vm488, 1.0, %v2152
    %v2206 = vsel %vm488, 1.0, %v2158
    %v2207 = vsel %vm488, 1.0, %v2164
    %v2208 = vsel %vm488, 1.0, %v2170
    %v2209 = vsel %vm488, 1.0, %v2176
    %2210 = vmatprep.subr.mxu0 0.0
    %2211 = vmatpush1.xpose.msra.mxu0 %v2209
    %2212 = vmatprep.subr.mxu0 0.0
    %2213 = vmatpush1.xpose.msra.mxu0 %v2208
    %2214 = vmatprep.subr.mxu0 0.0
    %2215 = vmatpush1.xpose.msra.mxu0 %v2207
    %2216 = vmatprep.subr.mxu0 0.0
    %2217 = vmatpush1.xpose.msra.mxu0 %v2206
    %2218 = vmatprep.subr.mxu0 0.0
    %2219 = vmatpush1.xpose.msra.mxu0 %v2205
    %2220 = vmatprep.subr.mxu0 0.0
    %2221 = vmatpush1.xpose.msra.mxu0 %v2204
    %2222 = vmatprep.subr.mxu0 0.0
    %2223 = vmatpush1.xpose.msra.mxu0 %v2203
    %2224 = vmatprep.subr.mxu0 0.0
    %2225 = vmatpush1.xpose.msra.mxu0 %v2202
    %2226 = vmatprep.subr.mxu0 0.0
    %2227 = vmatpush1.xpose.msra.mxu0 %v2201
    %2228 = vmatprep.subr.mxu0 0.0
    %2229 = vmatpush1.xpose.msra.mxu0 %v2200
    %2230 = vmatprep.subr.mxu0 0.0
    %2231 = vmatpush1.xpose.msra.mxu0 %v2199
    %2232 = vmatprep.subr.mxu0 0.0
    %2233 = vmatpush1.xpose.msra.mxu0 %v2198
    %2234 = vmatprep.subr.mxu0 0.0
    %2235 = vmatpush1.xpose.msra.mxu0 %v2197
    %2236 = vmatprep.subr.mxu0 0.0
    %2237 = vmatpush1.xpose.msra.mxu0 %v2196
    %2238 = vmatprep.subr.mxu0 0.0
    %2239 = vmatpush1.xpose.msra.mxu0 %v2195
    %2240 = vmatprep.subr.mxu0 0.0
    %2241 = vmatpush1.xpose.msra.mxu0 %v2194
    %2242 = vmatprep.subr.mxu0 0.0
    %2243 = vmatpush2.xpose.msra.mxu0 0.0
    %2244 = vmatprep.subr.mxu0 0.0
    %2245 = vmatpush2.xpose.msra.mxu0 0.0
    %2246 = vmatprep.subr.mxu0 0.0
    %2247 = vmatpush2.xpose.msra.mxu0 0.0
    %2248 = vmatprep.subr.mxu0 0.0
    %2249 = vmatpush2.xpose.msra.mxu0 0.0
    %2250 = vmatprep.subr.mxu0 0.0
    %2251 = vmatpush2.xpose.msra.mxu0 0.0
    %2252 = vmatprep.subr.mxu0 0.0
    %2253 = vmatpush2.xpose.msra.mxu0 0.0
    %2254 = vmatprep.subr.mxu0 0.0
    %2255 = vmatpush2.xpose.msra.mxu0 0.0
    %2256 = vmatprep.subr.mxu0 0.0
    %2257 = vmatpush2.xpose.msra.mxu0 0.0
    %2258 = vmatprep.subr.mxu0 0.0
    %2259 = vmatpush2.xpose.msra.mxu0 0.0
    %2260 = vmatprep.subr.mxu0 0.0
    %2261 = vmatpush2.xpose.msra.mxu0 0.0
    %2262 = vmatprep.subr.mxu0 0.0
    %2263 = vmatpush2.xpose.msra.mxu0 0.0
    %2264 = vmatprep.subr.mxu0 0.0
    %2265 = vmatpush2.xpose.msra.mxu0 0.0
    %2266 = vmatprep.subr.mxu0 0.0
    %2267 = vmatpush2.xpose.msra.mxu0 0.0
    %2268 = vmatprep.subr.mxu0 0.0
    %2269 = vmatpush2.xpose.msra.mxu0 0.0
    %2270 = vmatprep.subr.mxu0 0.0
    %2271 = vmatpush2.xpose.msra.mxu0 0.0
    %2272 = vmatprep.subr.mxu0 0.0
    %2273 = vmatpush2.xpose.msra.mxu0 0.0
    %2274 = vmatprep.mubr.f32.mxu0 0.0
    %2275 = vmatmul.mubr.f32.gmra.mxu0 %v2178
    %v2276 = vpop.f32.mrf.mxu0
    %v2277 = vadd.f32 0.0, %v2276
    %v2278 = vpop.f32.mrf.mxu0
    %2279 = vmatprep.mubr.f32.mxu0 0.0
    %2280 = vmatmul.mubr.f32.gmra.mxu0 %v2179
    %v2281 = vpop.f32.mrf.mxu0
    %v2282 = vadd.f32 0.0, %v2281
    %v2283 = vpop.f32.mrf.mxu0
    %2284 = vmatprep.mubr.f32.mxu0 0.0
    %2285 = vmatmul.mubr.f32.gmra.mxu0 %v2180
    %v2286 = vpop.f32.mrf.mxu0
    %v2287 = vadd.f32 0.0, %v2286
    %v2288 = vpop.f32.mrf.mxu0
    %2289 = vmatprep.mubr.f32.mxu0 0.0
    %2290 = vmatmul.mubr.f32.gmra.mxu0 %v2181
    %v2291 = vpop.f32.mrf.mxu0
    %v2292 = vadd.f32 0.0, %v2291
    %v2293 = vpop.f32.mrf.mxu0
    %2294 = vmatprep.mubr.f32.mxu0 0.0
    %2295 = vmatmul.mubr.f32.gmra.mxu0 %v2182
    %v2296 = vpop.f32.mrf.mxu0
    %v2297 = vadd.f32 0.0, %v2296
    %v2298 = vpop.f32.mrf.mxu0
    %2299 = vmatprep.mubr.f32.mxu0 0.0
    %2300 = vmatmul.mubr.f32.gmra.mxu0 %v2183
    %v2301 = vpop.f32.mrf.mxu0
    %v2302 = vadd.f32 0.0, %v2301
    %v2303 = vpop.f32.mrf.mxu0
    %2304 = vmatprep.mubr.f32.mxu0 0.0
    %2305 = vmatmul.mubr.f32.gmra.mxu0 %v2184
    %v2306 = vpop.f32.mrf.mxu0
    %v2307 = vadd.f32 0.0, %v2306
    %v2308 = vpop.f32.mrf.mxu0
    %2309 = vmatprep.mubr.f32.mxu0 0.0
    %2310 = vmatmul.mubr.f32.gmra.mxu0 %v2185
    %v2311 = vpop.f32.mrf.mxu0
    %v2312 = vadd.f32 0.0, %v2311
    %v2313 = vpop.f32.mrf.mxu0
    %2314 = vmatprep.mubr.f32.mxu0 0.0
    %2315 = vmatmul.mubr.f32.gmra.mxu0 %v2186
    %v2316 = vpop.f32.mrf.mxu0
    %v2317 = vadd.f32 0.0, %v2316
    %v2318 = vpop.f32.mrf.mxu0
    %2319 = vmatprep.mubr.f32.mxu0 0.0
    %2320 = vmatmul.mubr.f32.gmra.mxu0 %v2187
    %v2321 = vpop.f32.mrf.mxu0
    %v2322 = vadd.f32 0.0, %v2321
    %v2323 = vpop.f32.mrf.mxu0
    %2324 = vmatprep.mubr.f32.mxu0 0.0
    %2325 = vmatmul.mubr.f32.gmra.mxu0 %v2188
    %v2326 = vpop.f32.mrf.mxu0
    %v2327 = vadd.f32 0.0, %v2326
    %v2328 = vpop.f32.mrf.mxu0
    %2329 = vmatprep.mubr.f32.mxu0 0.0
    %2330 = vmatmul.mubr.f32.gmra.mxu0 %v2189
    %v2331 = vpop.f32.mrf.mxu0
    %v2332 = vadd.f32 0.0, %v2331
    %v2333 = vpop.f32.mrf.mxu0
    %2334 = vmatprep.mubr.f32.mxu0 0.0
    %2335 = vmatmul.mubr.f32.gmra.mxu0 %v2190
    %v2336 = vpop.f32.mrf.mxu0
    %v2337 = vadd.f32 0.0, %v2336
    %v2338 = vpop.f32.mrf.mxu0
    %2339 = vmatprep.mubr.f32.mxu0 0.0
    %2340 = vmatmul.mubr.f32.gmra.mxu0 %v2191
    %v2341 = vpop.f32.mrf.mxu0
    %v2342 = vadd.f32 0.0, %v2341
    %v2343 = vpop.f32.mrf.mxu0
    %2344 = vmatprep.mubr.f32.mxu0 0.0
    %2345 = vmatmul.mubr.f32.gmra.mxu0 %v2192
    %v2346 = vpop.f32.mrf.mxu0
    %v2347 = vadd.f32 0.0, %v2346
    %v2348 = vpop.f32.mrf.mxu0
    %2349 = vmatprep.mubr.f32.mxu0 0.0
    %2350 = vmatmul.mubr.f32.gmra.mxu0 %v2193
    %v2351 = vpop.f32.mrf.mxu0
    %v2352 = vadd.f32 0.0, %v2351
    %v2353 = vpop.f32.mrf.mxu0
    %2354 = vdwg.mxu0
    %v2355 = vmul.f32 %v2277, 0.2
    %v2356 = vmul.f32 %v2282, 0.2
    %v2357 = vmul.f32 %v2287, 0.2
    %v2358 = vmul.f32 %v2292, 0.2
    %v2359 = vmul.f32 %v2297, 0.2
    %v2360 = vmul.f32 %v2302, 0.2
    %v2361 = vmul.f32 %v2307, 0.2
    %v2362 = vmul.f32 %v2312, 0.2
    %v2363 = vmul.f32 %v2317, 0.2
    %v2364 = vmul.f32 %v2322, 0.2
    %v2365 = vmul.f32 %v2327, 0.2
    %v2366 = vmul.f32 %v2332, 0.2
    %v2367 = vmul.f32 %v2337, 0.2
    %v2368 = vmul.f32 %v2342, 0.2
    %v2369 = vmul.f32 %v2347, 0.2
    %v2370 = vmul.f32 %v2352, 0.2
    %v2371 = vmax.f32 %v2277, %v2355
    %v2372 = vmax.f32 %v2282, %v2356
    %v2373 = vmax.f32 %v2287, %v2357
    %v2374 = vmax.f32 %v2292, %v2358
    %v2375 = vmax.f32 %v2297, %v2359
    %v2376 = vmax.f32 %v2302, %v2360
    %v2377 = vmax.f32 %v2307, %v2361
    %v2378 = vmax.f32 %v2312, %v2362
    %v2379 = vmax.f32 %v2317, %v2363
    %v2380 = vmax.f32 %v2322, %v2364
    %v2381 = vmax.f32 %v2327, %v2365
    %v2382 = vmax.f32 %v2332, %v2366
    %v2383 = vmax.f32 %v2337, %v2367
    %v2384 = vmax.f32 %v2342, %v2368
    %v2385 = vmax.f32 %v2347, %v2369
    %v2386 = vmax.f32 %v2352, %v2370
    %v2387 = vadd.f32 %v2371, %v70
    %v2388 = vadd.f32 %v2372, %v71
    %v2389 = vadd.f32 %v2373, %v72
    %v2390 = vadd.f32 %v2374, %v73
    %v2391 = vadd.f32 %v2375, %v74
    %v2392 = vadd.f32 %v2376, %v75
    %v2393 = vadd.f32 %v2377, %v76
    %v2394 = vadd.f32 %v2378, %v77
    %v2395 = vadd.f32 %v2379, %v78
    %v2396 = vadd.f32 %v2380, %v79
    %v2397 = vadd.f32 %v2381, %v80
    %v2398 = vadd.f32 %v2382, %v81
    %v2399 = vadd.f32 %v2383, %v82
    %v2400 = vadd.f32 %v2384, %v83
    %v2401 = vadd.f32 %v2385, %v84
    %v2402 = vadd.f32 %v2386, %v85
    %2403 = vmax.xlane.f32.xlu0 %v2387
    %v2404 = vpop.xlane.xlu0 %2403
    %2405 = vmax.xlane.f32.xlu0 %v2388
    %v2406 = vpop.xlane.xlu0 %2405
    %2407 = vmax.xlane.f32.xlu0 %v2389
    %v2408 = vpop.xlane.xlu0 %2407
    %2409 = vmax.xlane.f32.xlu0 %v2390
    %v2410 = vpop.xlane.xlu0 %2409
    %2411 = vmax.xlane.f32.xlu0 %v2391
    %v2412 = vpop.xlane.xlu0 %2411
    %2413 = vmax.xlane.f32.xlu0 %v2392
    %v2414 = vpop.xlane.xlu0 %2413
    %2415 = vmax.xlane.f32.xlu0 %v2393
    %v2416 = vpop.xlane.xlu0 %2415
    %2417 = vmax.xlane.f32.xlu0 %v2394
    %v2418 = vpop.xlane.xlu0 %2417
    %2419 = vmax.xlane.f32.xlu0 %v2395
    %v2420 = vpop.xlane.xlu0 %2419
    %2421 = vmax.xlane.f32.xlu0 %v2396
    %v2422 = vpop.xlane.xlu0 %2421
    %2423 = vmax.xlane.f32.xlu0 %v2397
    %v2424 = vpop.xlane.xlu0 %2423
    %2425 = vmax.xlane.f32.xlu0 %v2398
    %v2426 = vpop.xlane.xlu0 %2425
    %2427 = vmax.xlane.f32.xlu0 %v2399
    %v2428 = vpop.xlane.xlu0 %2427
    %2429 = vmax.xlane.f32.xlu0 %v2400
    %v2430 = vpop.xlane.xlu0 %2429
    %2431 = vmax.xlane.f32.xlu0 %v2401
    %v2432 = vpop.xlane.xlu0 %2431
    %2433 = vmax.xlane.f32.xlu0 %v2402
    %v2434 = vpop.xlane.xlu0 %2433
    %v2435 = vsub.f32 %v2387, %v2404
    %v2436 = vsub.f32 %v2388, %v2406
    %v2437 = vsub.f32 %v2389, %v2408
    %v2438 = vsub.f32 %v2390, %v2410
    %v2439 = vsub.f32 %v2391, %v2412
    %v2440 = vsub.f32 %v2392, %v2414
    %v2441 = vsub.f32 %v2393, %v2416
    %v2442 = vsub.f32 %v2394, %v2418
    %v2443 = vsub.f32 %v2395, %v2420
    %v2444 = vsub.f32 %v2396, %v2422
    %v2445 = vsub.f32 %v2397, %v2424
    %v2446 = vsub.f32 %v2398, %v2426
    %v2447 = vsub.f32 %v2399, %v2428
    %v2448 = vsub.f32 %v2400, %v2430
    %v2449 = vsub.f32 %v2401, %v2432
    %v2450 = vsub.f32 %v2402, %v2434
    %v2451 = vmul.f32 %v2435, 1.442695
    %v2452 = vpow.pop %v2451
    %v2453 = vmul.f32 %v2436, 1.442695
    %v2454 = vpow.pop %v2453
    %v2455 = vmul.f32 %v2437, 1.442695
    %v2456 = vpow.pop %v2455
    %v2457 = vmul.f32 %v2438, 1.442695
    %v2458 = vpow.pop %v2457
    %v2459 = vmul.f32 %v2439, 1.442695
    %v2460 = vpow.pop %v2459
    %v2461 = vmul.f32 %v2440, 1.442695
    %v2462 = vpow.pop %v2461
    %v2463 = vmul.f32 %v2441, 1.442695
    %v2464 = vpow.pop %v2463
    %v2465 = vmul.f32 %v2442, 1.442695
    %v2466 = vpow.pop %v2465
    %v2467 = vmul.f32 %v2443, 1.442695
    %v2468 = vpow.pop %v2467
    %v2469 = vmul.f32 %v2444, 1.442695
    %v2470 = vpow.pop %v2469
    %v2471 = vmul.f32 %v2445, 1.442695
    %v2472 = vpow.pop %v2471
    %v2473 = vmul.f32 %v2446, 1.442695
    %v2474 = vpow.pop %v2473
    %v2475 = vmul.f32 %v2447, 1.442695
    %v2476 = vpow.pop %v2475
    %v2477 = vmul.f32 %v2448, 1.442695
    %v2478 = vpow.pop %v2477
    %v2479 = vmul.f32 %v2449, 1.442695
    %v2480 = vpow.pop %v2479
    %v2481 = vmul.f32 %v2450, 1.442695
    %v2482 = vpow.pop %v2481
    %2483 = vadd.xlane.f32.xlu0 %v2452
    %v2484 = vpop.xlane.xlu0 %2483
    %2485 = vadd.xlane.f32.xlu0 %v2454
    %v2486 = vpop.xlane.xlu0 %2485
    %2487 = vadd.xlane.f32.xlu0 %v2456
    %v2488 = vpop.xlane.xlu0 %2487
    %2489 = vadd.xlane.f32.xlu0 %v2458
    %v2490 = vpop.xlane.xlu0 %2489
    %2491 = vadd.xlane.f32.xlu0 %v2460
    %v2492 = vpop.xlane.xlu0 %2491
    %2493 = vadd.xlane.f32.xlu0 %v2462
    %v2494 = vpop.xlane.xlu0 %2493
    %2495 = vadd.xlane.f32.xlu0 %v2464
    %v2496 = vpop.xlane.xlu0 %2495
    %2497 = vadd.xlane.f32.xlu0 %v2466
    %v2498 = vpop.xlane.xlu0 %2497
    %2499 = vadd.xlane.f32.xlu0 %v2468
    %v2500 = vpop.xlane.xlu0 %2499
    %2501 = vadd.xlane.f32.xlu0 %v2470
    %v2502 = vpop.xlane.xlu0 %2501
    %2503 = vadd.xlane.f32.xlu0 %v2472
    %v2504 = vpop.xlane.xlu0 %2503
    %2505 = vadd.xlane.f32.xlu0 %v2474
    %v2506 = vpop.xlane.xlu0 %2505
    %2507 = vadd.xlane.f32.xlu0 %v2476
    %v2508 = vpop.xlane.xlu0 %2507
    %2509 = vadd.xlane.f32.xlu0 %v2478
    %v2510 = vpop.xlane.xlu0 %2509
    %2511 = vadd.xlane.f32.xlu0 %v2480
    %v2512 = vpop.xlane.xlu0 %2511
    %2513 = vadd.xlane.f32.xlu0 %v2482
    %v2514 = vpop.xlane.xlu0 %2513
    %v2515 = vmax.f32 %v2484, 1e-30
    %v2516 = vmax.f32 %v2486, 1e-30
    %v2517 = vmax.f32 %v2488, 1e-30
    %v2518 = vmax.f32 %v2490, 1e-30
    %v2519 = vmax.f32 %v2492, 1e-30
    %v2520 = vmax.f32 %v2494, 1e-30
    %v2521 = vmax.f32 %v2496, 1e-30
    %v2522 = vmax.f32 %v2498, 1e-30
    %v2523 = vmax.f32 %v2500, 1e-30
    %v2524 = vmax.f32 %v2502, 1e-30
    %v2525 = vmax.f32 %v2504, 1e-30
    %v2526 = vmax.f32 %v2506, 1e-30
    %v2527 = vmax.f32 %v2508, 1e-30
    %v2528 = vmax.f32 %v2510, 1e-30
    %v2529 = vmax.f32 %v2512, 1e-30
    %v2530 = vmax.f32 %v2514, 1e-30
    %2531 = vmatprep.subr.mxu0 0.0
    %2532 = vmatpush1.msra.mxu0 %v2174
    %2533 = vmatprep.subr.mxu0 0.0
    %2534 = vmatpush1.msra.mxu0 %v2168
    %2535 = vmatprep.subr.mxu0 0.0
    %2536 = vmatpush1.msra.mxu0 %v2162
    %2537 = vmatprep.subr.mxu0 0.0
    %2538 = vmatpush1.msra.mxu0 %v2156
    %2539 = vmatprep.subr.mxu0 0.0
    %2540 = vmatpush1.msra.mxu0 %v2150
    %2541 = vmatprep.subr.mxu0 0.0
    %2542 = vmatpush1.msra.mxu0 %v2144
    %2543 = vmatprep.subr.mxu0 0.0
    %2544 = vmatpush1.msra.mxu0 %v2138
    %2545 = vmatprep.subr.mxu0 0.0
    %2546 = vmatpush1.msra.mxu0 %v2132
    %2547 = vmatprep.subr.mxu0 0.0
    %2548 = vmatpush1.msra.mxu0 %v2126
    %2549 = vmatprep.subr.mxu0 0.0
    %2550 = vmatpush1.msra.mxu0 %v2120
    %2551 = vmatprep.subr.mxu0 0.0
    %2552 = vmatpush1.msra.mxu0 %v2114
    %2553 = vmatprep.subr.mxu0 0.0
    %2554 = vmatpush1.msra.mxu0 %v2108
    %2555 = vmatprep.subr.mxu0 0.0
    %2556 = vmatpush1.msra.mxu0 %v2102
    %2557 = vmatprep.subr.mxu0 0.0
    %2558 = vmatpush1.msra.mxu0 %v2096
    %2559 = vmatprep.subr.mxu0 0.0
    %2560 = vmatpush1.msra.mxu0 %v2090
    %2561 = vmatprep.subr.mxu0 0.0
    %2562 = vmatpush1.msra.mxu0 %v2084
    %2563 = vmatprep.subr.mxu0 0.0
    %2564 = vmatpush2.msra.mxu0 0.0
    %2565 = vmatprep.subr.mxu0 0.0
    %2566 = vmatpush2.msra.mxu0 0.0
    %2567 = vmatprep.subr.mxu0 0.0
    %2568 = vmatpush2.msra.mxu0 0.0
    %2569 = vmatprep.subr.mxu0 0.0
    %2570 = vmatpush2.msra.mxu0 0.0
    %2571 = vmatprep.subr.mxu0 0.0
    %2572 = vmatpush2.msra.mxu0 0.0
    %2573 = vmatprep.subr.mxu0 0.0
    %2574 = vmatpush2.msra.mxu0 0.0
    %2575 = vmatprep.subr.mxu0 0.0
    %2576 = vmatpush2.msra.mxu0 0.0
    %2577 = vmatprep.subr.mxu0 0.0
    %2578 = vmatpush2.msra.mxu0 0.0
    %2579 = vmatprep.subr.mxu0 0.0
    %2580 = vmatpush2.msra.mxu0 0.0
    %2581 = vmatprep.subr.mxu0 0.0
    %2582 = vmatpush2.msra.mxu0 0.0
    %2583 = vmatprep.subr.mxu0 0.0
    %2584 = vmatpush2.msra.mxu0 0.0
    %2585 = vmatprep.subr.mxu0 0.0
    %2586 = vmatpush2.msra.mxu0 0.0
    %2587 = vmatprep.subr.mxu0 0.0
    %2588 = vmatpush2.msra.mxu0 0.0
    %2589 = vmatprep.subr.mxu0 0.0
    %2590 = vmatpush2.msra.mxu0 0.0
    %2591 = vmatprep.subr.mxu0 0.0
    %2592 = vmatpush2.msra.mxu0 0.0
    %2593 = vmatprep.subr.mxu0 0.0
    %2594 = vmatpush2.msra.mxu0 0.0
    %2595 = vmatprep.mubr.f32.mxu0 0.0
    %2596 = vmatmul.mubr.f32.gmra.mxu0 %v2452
    %v2597 = vpop.f32.mrf.mxu0
    %v2598 = vadd.f32 0.0, %v2597
    %v2599 = vpop.f32.mrf.mxu0
    %2600 = vmatprep.mubr.f32.mxu0 0.0
    %2601 = vmatmul.mubr.f32.gmra.mxu0 %v2454
    %v2602 = vpop.f32.mrf.mxu0
    %v2603 = vadd.f32 0.0, %v2602
    %v2604 = vpop.f32.mrf.mxu0
    %2605 = vmatprep.mubr.f32.mxu0 0.0
    %2606 = vmatmul.mubr.f32.gmra.mxu0 %v2456
    %v2607 = vpop.f32.mrf.mxu0
    %v2608 = vadd.f32 0.0, %v2607
    %v2609 = vpop.f32.mrf.mxu0
    %2610 = vmatprep.mubr.f32.mxu0 0.0
    %2611 = vmatmul.mubr.f32.gmra.mxu0 %v2458
    %v2612 = vpop.f32.mrf.mxu0
    %v2613 = vadd.f32 0.0, %v2612
    %v2614 = vpop.f32.mrf.mxu0
    %2615 = vmatprep.mubr.f32.mxu0 0.0
    %2616 = vmatmul.mubr.f32.gmra.mxu0 %v2460
    %v2617 = vpop.f32.mrf.mxu0
    %v2618 = vadd.f32 0.0, %v2617
    %v2619 = vpop.f32.mrf.mxu0
    %2620 = vmatprep.mubr.f32.mxu0 0.0
    %2621 = vmatmul.mubr.f32.gmra.mxu0 %v2462
    %v2622 = vpop.f32.mrf.mxu0
    %v2623 = vadd.f32 0.0, %v2622
    %v2624 = vpop.f32.mrf.mxu0
    %2625 = vmatprep.mubr.f32.mxu0 0.0
    %2626 = vmatmul.mubr.f32.gmra.mxu0 %v2464
    %v2627 = vpop.f32.mrf.mxu0
    %v2628 = vadd.f32 0.0, %v2627
    %v2629 = vpop.f32.mrf.mxu0
    %2630 = vmatprep.mubr.f32.mxu0 0.0
    %2631 = vmatmul.mubr.f32.gmra.mxu0 %v2466
    %v2632 = vpop.f32.mrf.mxu0
    %v2633 = vadd.f32 0.0, %v2632
    %v2634 = vpop.f32.mrf.mxu0
    %2635 = vmatprep.mubr.f32.mxu0 0.0
    %2636 = vmatmul.mubr.f32.gmra.mxu0 %v2468
    %v2637 = vpop.f32.mrf.mxu0
    %v2638 = vadd.f32 0.0, %v2637
    %v2639 = vpop.f32.mrf.mxu0
    %2640 = vmatprep.mubr.f32.mxu0 0.0
    %2641 = vmatmul.mubr.f32.gmra.mxu0 %v2470
    %v2642 = vpop.f32.mrf.mxu0
    %v2643 = vadd.f32 0.0, %v2642
    %v2644 = vpop.f32.mrf.mxu0
    %2645 = vmatprep.mubr.f32.mxu0 0.0
    %2646 = vmatmul.mubr.f32.gmra.mxu0 %v2472
    %v2647 = vpop.f32.mrf.mxu0
    %v2648 = vadd.f32 0.0, %v2647
    %v2649 = vpop.f32.mrf.mxu0
    %2650 = vmatprep.mubr.f32.mxu0 0.0
    %2651 = vmatmul.mubr.f32.gmra.mxu0 %v2474
    %v2652 = vpop.f32.mrf.mxu0
    %v2653 = vadd.f32 0.0, %v2652
    %v2654 = vpop.f32.mrf.mxu0
    %2655 = vmatprep.mubr.f32.mxu0 0.0
    %2656 = vmatmul.mubr.f32.gmra.mxu0 %v2476
    %v2657 = vpop.f32.mrf.mxu0
    %v2658 = vadd.f32 0.0, %v2657
    %v2659 = vpop.f32.mrf.mxu0
    %2660 = vmatprep.mubr.f32.mxu0 0.0
    %2661 = vmatmul.mubr.f32.gmra.mxu0 %v2478
    %v2662 = vpop.f32.mrf.mxu0
    %v2663 = vadd.f32 0.0, %v2662
    %v2664 = vpop.f32.mrf.mxu0
    %2665 = vmatprep.mubr.f32.mxu0 0.0
    %2666 = vmatmul.mubr.f32.gmra.mxu0 %v2480
    %v2667 = vpop.f32.mrf.mxu0
    %v2668 = vadd.f32 0.0, %v2667
    %v2669 = vpop.f32.mrf.mxu0
    %2670 = vmatprep.mubr.f32.mxu0 0.0
    %2671 = vmatmul.mubr.f32.gmra.mxu0 %v2482
    %v2672 = vpop.f32.mrf.mxu0
    %v2673 = vadd.f32 0.0, %v2672
    %v2674 = vpop.f32.mrf.mxu0
    %2675 = vdwg.mxu0
    %v2676 = vrcp.pop %v2515
    %v2677 = vmul.f32 1.0, %v2676
    %v2678 = vrcp.pop %v2516
    %v2679 = vmul.f32 1.0, %v2678
    %v2680 = vrcp.pop %v2517
    %v2681 = vmul.f32 1.0, %v2680
    %v2682 = vrcp.pop %v2518
    %v2683 = vmul.f32 1.0, %v2682
    %v2684 = vrcp.pop %v2519
    %v2685 = vmul.f32 1.0, %v2684
    %v2686 = vrcp.pop %v2520
    %v2687 = vmul.f32 1.0, %v2686
    %v2688 = vrcp.pop %v2521
    %v2689 = vmul.f32 1.0, %v2688
    %v2690 = vrcp.pop %v2522
    %v2691 = vmul.f32 1.0, %v2690
    %v2692 = vrcp.pop %v2523
    %v2693 = vmul.f32 1.0, %v2692
    %v2694 = vrcp.pop %v2524
    %v2695 = vmul.f32 1.0, %v2694
    %v2696 = vrcp.pop %v2525
    %v2697 = vmul.f32 1.0, %v2696
    %v2698 = vrcp.pop %v2526
    %v2699 = vmul.f32 1.0, %v2698
    %v2700 = vrcp.pop %v2527
    %v2701 = vmul.f32 1.0, %v2700
    %v2702 = vrcp.pop %v2528
    %v2703 = vmul.f32 1.0, %v2702
    %v2704 = vrcp.pop %v2529
    %v2705 = vmul.f32 1.0, %v2704
    %v2706 = vrcp.pop %v2530
    %v2707 = vmul.f32 1.0, %v2706
    %v2708 = vmul.f32 %v2598, %v2677
    %v2709 = vmul.f32 %v2603, %v2679
    %v2710 = vmul.f32 %v2608, %v2681
    %v2711 = vmul.f32 %v2613, %v2683
    %v2712 = vmul.f32 %v2618, %v2685
    %v2713 = vmul.f32 %v2623, %v2687
    %v2714 = vmul.f32 %v2628, %v2689
    %v2715 = vmul.f32 %v2633, %v2691
    %v2716 = vmul.f32 %v2638, %v2693
    %v2717 = vmul.f32 %v2643, %v2695
    %v2718 = vmul.f32 %v2648, %v2697
    %v2719 = vmul.f32 %v2653, %v2699
    %v2720 = vmul.f32 %v2658, %v2701
    %v2721 = vmul.f32 %v2663, %v2703
    %v2722 = vmul.f32 %v2668, %v2705
    %v2723 = vmul.f32 %v2673, %v2707
    %v2724 = vld [vmem:[%s7] sm:$0x1]
    %v2726 = vlaneseq
    %v2727 = vshrl.u32 %v2726, 7
    %v2728 = vsub.s32 0, %v2727
    %v2729 = vrot.slane %v2724, %v2728
    %v2731 = vadd.f32 %v2708, %v2729
    %v2732 = vadd.f32 %v2709, %v2729
    %v2733 = vadd.f32 %v2710, %v2729
    %v2734 = vadd.f32 %v2711, %v2729
    %v2735 = vadd.f32 %v2712, %v2729
    %v2736 = vadd.f32 %v2713, %v2729
    %v2737 = vadd.f32 %v2714, %v2729
    %v2738 = vadd.f32 %v2715, %v2729
    %v2739 = vadd.f32 %v2716, %v2729
    %v2740 = vadd.f32 %v2717, %v2729
    %v2741 = vadd.f32 %v2718, %v2729
    %v2742 = vadd.f32 %v2719, %v2729
    %v2743 = vadd.f32 %v2720, %v2729
    %v2744 = vadd.f32 %v2721, %v2729
    %v2745 = vadd.f32 %v2722, %v2729
    %v2746 = vadd.f32 %v2723, %v2729
    %2747 = vst [vmem:[%s8] sm:$0xff] %v2731
    %2748 = vst [vmem:[%s8 + $0x8] sm:$0xff] %v2732
    %2749 = vst [vmem:[%s8 + $0x10] sm:$0xff] %v2733
    %2750 = vst [vmem:[%s8 + $0x18] sm:$0xff] %v2734
    %2751 = vst [vmem:[%s8 + $0x20] sm:$0xff] %v2735
    %2752 = vst [vmem:[%s8 + $0x28] sm:$0xff] %v2736
    %2753 = vst [vmem:[%s8 + $0x30] sm:$0xff] %v2737
    %2754 = vst [vmem:[%s8 + $0x38] sm:$0xff] %v2738
    %2755 = vst [vmem:[%s8 + $0x40] sm:$0xff] %v2739
    %2756 = vst [vmem:[%s8 + $0x48] sm:$0xff] %v2740
    %2757 = vst [vmem:[%s8 + $0x50] sm:$0xff] %v2741
    %2758 = vst [vmem:[%s8 + $0x58] sm:$0xff] %v2742
    %2759 = vst [vmem:[%s8 + $0x60] sm:$0xff] %v2743
    %2760 = vst [vmem:[%s8 + $0x68] sm:$0xff] %v2744
    %2761 = vst [vmem:[%s8 + $0x70] sm:$0xff] %v2745
    %2762 = vst [vmem:[%s8 + $0x78] sm:$0xff] %v2746
    // Predicated region
    $region46: #{gat_forward.1} parent=1 // pred_check
      _
    $region47: #{gat_forward.1} parent=1 // pred_check_branch
      %2764 = sbr.rel (0) target = $region49
    $region48: #{gat_forward.1} parent=1 // pred_region
      _
    $region49: #{gat_forward.1} parent=1 // pred_fallthru
      _
    // Predicated region
    $region50: #{gat_forward.1} parent=1 // pred_check
      _
    $region51: #{gat_forward.1} parent=1 // pred_check_branch
      %2766 = sbr.rel (0) target = $region53
    $region52: #{gat_forward.1} parent=1 // pred_region
      _
    $region53: #{gat_forward.1} parent=1 // pred_fallthru
      _
    %2767 = vsyncpa [#allocation3], 1
    %2768 = vsyncpa [#allocation5], 1

</llo_original>
